<compile_context>
chip_gen: v7x
topology: tpu7x:2x2x1
jax: 0.10.0
libtpu: 0.0.40
codegen_flags: <defaults>
</compile_context>

<pallas_src>
import jax
import jax.numpy as jnp
from jax import lax
from jax.experimental import pallas as pl
from jax.experimental.pallas import tpu as pltpu

LANE = 128     # f32 lane width
SUBLANE = 8    # f32 sublane count


def _round_up(x, m):
    return ((x + m - 1) // m) * m


def _pad_gate_blocks(w, h, h_pad):
    """Zero-pad each of the 4 gate blocks (PyTorch order i,f,g,o) along the
    last axis from width h to h_pad (semantics-preserving for the LSTM)."""
    if h_pad == h:
        return w
    lead = w.shape[:-1]
    w4 = w.reshape(*lead, 4, h)
    pad = [(0, 0)] * (len(lead) + 1) + [(0, h_pad - h)]
    return jnp.pad(w4, pad).reshape(*lead, 4 * h_pad)


def _pick_t_chunk(t_len, b_tile, e, h_pad, requested=None,
                  budget_bytes=4 * 1024 * 1024):
    """Largest divisor of T that fits the per-chunk VMEM budget
    (double-buffered x chunk + projected-gates scratch)."""
    cap = requested if requested is not None else 128
    best = 1
    for d in range(1, t_len + 1):
        if t_len % d or d > cap:
            continue
        need = (2 * d * b_tile * e + d * b_tile * 4 * h_pad) * 4
        if need <= budget_bytes:
            best = max(best, d)
    return best


def _vmem_bytes_estimate(t_chunk, b_tile, e, h_pad, o_pad):
    f32 = 4
    x_bufs = 2 * t_chunk * b_tile * e * f32                      # pipelined x
    weights = (e * 4 * h_pad + h_pad * 4 * h_pad + 4 * h_pad
               + h_pad * o_pad + o_pad) * f32
    scratch = (2 * b_tile * h_pad + t_chunk * b_tile * 4 * h_pad) * f32
    out = 2 * b_tile * o_pad * f32
    return x_bufs + 2 * weights + scratch + out


def lstm_fc_kernel(x_ref, wih_ref, whh_ref, b_ref, wfc_ref, bfc_ref,
                   out_ref, h_scr, c_scr, gx_scr):
    """One (batch-tile, time-chunk) grid step of the LSTM + final FC.

    x_ref:   (T_CHUNK, B_TILE, E)    time-major activation chunk
    wih_ref: (E, 4*H_PAD)            i/f/o columns pre-scaled by 0.5
    whh_ref: (H_PAD, 4*H_PAD)        i/f/o columns pre-scaled by 0.5
    b_ref:   (1, 4*H_PAD)            combined bias, i/f/o pre-scaled by 0.5
    wfc_ref: (H_PAD, O_PAD), bfc_ref: (1, O_PAD)
    out_ref: (B_TILE, O_PAD)         written only on the last time chunk
    h_scr/c_scr: (B_TILE, H_PAD)     recurrent state (persists across chunks)
    gx_scr:  (T_CHUNK*B_TILE, 4*H_PAD)  projected gates for the whole chunk
    """
    t_chunk, b_tile, e = x_ref.shape
    h_pad = h_scr.shape[-1]
    ti = pl.program_id(1)

    @pl.when(ti == 0)
    def _init():
        h_scr[...] = jnp.zeros_like(h_scr)
        c_scr[...] = jnp.zeros_like(c_scr)

    # ---- Phase 1: chunk-batched input projection (one MXU matmul, off the
    #      serial dependency chain).  Bias broadcast happens once per chunk.
    x2d = x_ref[...].reshape(t_chunk * b_tile, e)
    gx_scr[...] = (jnp.dot(x2d, wih_ref[...],
                           preferred_element_type=jnp.float32)
                   + b_ref[...])

    # ---- Phase 2: recurrence.  Only h @ W_hh + elementwise per step.
    def step(t, carry):
        row = pl.multiple_of(t * b_tile, b_tile)
        gx_t = gx_scr[pl.ds(row, b_tile), :]                 # (B_TILE, 4H)
        gates = gx_t + jnp.dot(h_scr[...], whh_ref[...],
                               preferred_element_type=jnp.float32)
        # Single lane-dense tanh over the whole gate tile.
        # sigmoid(z) = 0.5*(tanh(z/2)+1); the /2 is folded into the weights.
        tg = jnp.tanh(gates)
        t_i = tg[:, 0 * h_pad:1 * h_pad]
        t_f = tg[:, 1 * h_pad:2 * h_pad]
        g_g = tg[:, 2 * h_pad:3 * h_pad]
        t_o = tg[:, 3 * h_pad:4 * h_pad]
        c_new = 0.5 * ((t_f + 1.0) * c_scr[...] + (t_i + 1.0) * g_g)
        c_scr[...] = c_new
        h_scr[...] = 0.5 * (t_o + 1.0) * jnp.tanh(c_new)
        return carry

    unroll = 4 if t_chunk % 4 == 0 else (2 if t_chunk % 2 == 0 else 1)
    lax.fori_loop(0, t_chunk, step, 0, unroll=unroll)

    # ---- Phase 3: final FC on the last time chunk (lane-dense padded store).
    @pl.when(ti == pl.num_programs(1) - 1)
    def _final():
        out_ref[...] = (jnp.dot(h_scr[...], wfc_ref[...],
                                preferred_element_type=jnp.float32)
                        + bfc_ref[...])


def sentiment_forward(input_ids, params, *, t_chunk=None, b_tile=None):
    """input_ids: (B, T) int32 -> logits (B, output_dim)."""
    emb_tbl = params["embedding"]                         # (V, E)
    w_ih = params["w_ih"]                                 # (E, 4H)
    w_hh = params["w_hh"]                                 # (H, 4H)
    b = params["b"]                                       # (1, 4H)
    w_fc = params["w_fc"]                                 # (H, O)
    b_fc = params["b_fc"]                                 # (1, O)

    B, T = input_ids.shape
    E = emb_tbl.shape[1]
    H = w_hh.shape[0]
    O = w_fc.shape[1]

    h_pad = _round_up(H, LANE)        # lane-aligned gate slices
    o_pad = _round_up(O, LANE)        # lane-dense output store
    b_pad = _round_up(B, SUBLANE)     # sublane-aligned batch

    # ---- Pad + pre-scale parameters (in deployment do this once at load
    #      time).  Zero-padding hidden units is semantics-preserving; 0.5
    #      folded into i/f/o columns enables the single-tanh gate trick.
    gate_scale = jnp.concatenate([
        jnp.full((h_pad,), 0.5, jnp.float32),
        jnp.full((h_pad,), 0.5, jnp.float32),
        jnp.ones((h_pad,), jnp.float32),
        jnp.full((h_pad,), 0.5, jnp.float32)])
    w_ih_p = _pad_gate_blocks(w_ih, H, h_pad) * gate_scale[None, :]
    w_hh_p = jnp.pad(_pad_gate_blocks(w_hh, H, h_pad),
                     ((0, h_pad - H), (0, 0))) * gate_scale[None, :]
    b_p = _pad_gate_blocks(b, H, h_pad) * gate_scale[None, :]
    w_fc_p = jnp.pad(w_fc, ((0, h_pad - H), (0, o_pad - O)))
    b_fc_p = jnp.pad(b_fc, ((0, 0), (0, o_pad - O)))

    # ---- Embedding gather, directly time-major (no extra transpose pass of
    #      the activations in HBM).
    # TODO(synk): move the gather into the kernel (PrefetchScalarGridSpec on
    # input_ids + per-row DMA from the HBM embedding table) to also drop the
    # XLA gather pass.
    x_tbe = jnp.take(emb_tbl, input_ids.T, axis=0)        # (T, B, E)
    if b_pad != B:
        x_tbe = jnp.pad(x_tbe, ((0, 0), (0, b_pad - B), (0, 0)))

    if b_tile is None:
        b_tile = b_pad            # split (multiple of 8) for v7x megacore
    assert b_pad % b_tile == 0 and b_tile % SUBLANE == 0
    n_b = b_pad // b_tile

    t_chunk = _pick_t_chunk(T, b_tile, E, h_pad, requested=t_chunk)
    n_t = T // t_chunk

    est = _vmem_bytes_estimate(t_chunk, b_tile, E, h_pad, o_pad)
    vmem_limit = int(min(48 * 1024 * 1024, max(32 * 1024 * 1024, 2 * est)))

    grid_spec = pltpu.PrefetchScalarGridSpec(
        num_scalar_prefetch=0,
        grid=(n_b, n_t),
        in_specs=[
            pl.BlockSpec((t_chunk, b_tile, E), lambda bi, ti: (ti, bi, 0)),
            pl.BlockSpec((E, 4 * h_pad), lambda bi, ti: (0, 0)),
            pl.BlockSpec((h_pad, 4 * h_pad), lambda bi, ti: (0, 0)),
            pl.BlockSpec((1, 4 * h_pad), lambda bi, ti: (0, 0)),
            pl.BlockSpec((h_pad, o_pad), lambda bi, ti: (0, 0)),
            pl.BlockSpec((1, o_pad), lambda bi, ti: (0, 0)),
        ],
        out_specs=pl.BlockSpec((b_tile, o_pad), lambda bi, ti: (bi, 0)),
        scratch_shapes=[
            pltpu.VMEM((b_tile, h_pad), jnp.float32),                 # h
            pltpu.VMEM((b_tile, h_pad), jnp.float32),                 # c
            pltpu.VMEM((t_chunk * b_tile, 4 * h_pad), jnp.float32),   # gx chunk
        ],
    )

    out_padded = pl.pallas_call(
        lstm_fc_kernel,
        out_shape=jax.ShapeDtypeStruct((b_pad, o_pad), jnp.float32),
        grid_spec=grid_spec,
        compiler_params=pltpu.CompilerParams(
            dimension_semantics=("parallel", "arbitrary"),
            vmem_limit_bytes=vmem_limit),
    )(x_tbe, w_ih_p, w_hh_p, b_p, w_fc_p, b_fc_p)

    return out_padded[:B, :O]


def init_params(key, vocab_size, embed_dim, hidden_dim, output_dim):
    ks = jax.random.split(key, 7)
    scale = 0.1
    return {
        "embedding": scale * jax.random.normal(ks[0], (vocab_size, embed_dim),
                                               jnp.float32),
        # PyTorch weight_ih_l0 is (4H, E); we store the transpose (E, 4H).
        "w_ih": scale * jax.random.normal(ks[1], (embed_dim, 4 * hidden_dim),
                                          jnp.float32),
        "w_hh": scale * jax.random.normal(ks[2], (hidden_dim, 4 * hidden_dim),
                                          jnp.float32),
        # combined bias = bias_ih + bias_hh
        "b": (scale * jax.random.normal(ks[3], (1, 4 * hidden_dim), jnp.float32)
              + scale * jax.random.normal(ks[4], (1, 4 * hidden_dim),
                                          jnp.float32)),
        "w_fc": scale * jax.random.normal(ks[5], (hidden_dim, output_dim),
                                          jnp.float32),
        "b_fc": scale * jax.random.normal(ks[6], (1, output_dim), jnp.float32),
    }


def reference_forward(input_ids, params):
    """Pure-JAX reference mirroring PyTorch LSTM semantics (gate order i,f,g,o)."""
    emb = jnp.take(params["embedding"], input_ids, axis=0)   # (B, T, E)
    B, T, E = emb.shape
    H = params["w_hh"].shape[0]
    h = jnp.zeros((B, H), jnp.float32)
    c = jnp.zeros((B, H), jnp.float32)
    for t in range(T):
        gates = emb[:, t, :] @ params["w_ih"] + h @ params["w_hh"] + params["b"]
        i = jax.nn.sigmoid(gates[:, 0 * H:1 * H])
        f = jax.nn.sigmoid(gates[:, 1 * H:2 * H])
        g = jnp.tanh(gates[:, 2 * H:3 * H])
        o = jax.nn.sigmoid(gates[:, 3 * H:4 * H])
        c = f * c + i * g
        h = o * jnp.tanh(c)
    return h @ params["w_fc"] + params["b_fc"]


if __name__ == "__main__":
    # Small shapes consistent with the module's forward (batch of token ids).
    vocab_size, embed_dim, hidden_dim, output_dim = 64, 32, 32, 3
    batch, seq = 2, 8

    key = jax.random.PRNGKey(0)
    k_param, k_ids = jax.random.split(key)
    params = init_params(k_param, vocab_size, embed_dim, hidden_dim, output_dim)
    input_ids = jax.random.randint(k_ids, (batch, seq), 0, vocab_size,
                                   dtype=jnp.int32)

    # t_chunk=4 -> grid=(1, 2): exercises the chunked/pipelined path with the
    # pl.when init/finalize gating.
    logits = sentiment_forward(input_ids, params, t_chunk=4)
    logits = jax.block_until_ready(logits)

    ref = reference_forward(input_ids, params)
    assert logits.shape == (batch, output_dim)
    assert jnp.allclose(logits, ref, atol=1e-4, rtol=1e-4), "mismatch vs reference"

    print("KERNEL_OK")
</pallas_src>

<mosaic_0001>
module attributes {stable_mosaic.version = 11 : i64} {
  func.func @lstm_fc_kernel(%arg0: i32, %arg1: i32, %arg2: memref<4x8x32xf32, #tpu.memory_space<vmem>>, %arg3: memref<32x512xf32, #tpu.memory_space<vmem>>, %arg4: memref<128x512xf32, #tpu.memory_space<vmem>>, %arg5: memref<1x512xf32, #tpu.memory_space<vmem>>, %arg6: memref<128x128xf32, #tpu.memory_space<vmem>>, %arg7: memref<1x128xf32, #tpu.memory_space<vmem>>, %arg8: memref<8x128xf32, #tpu.memory_space<vmem>>, %arg9: memref<8x128xf32, #tpu.memory_space<vmem>>, %arg10: memref<8x128xf32, #tpu.memory_space<vmem>>, %arg11: memref<32x512xf32, #tpu.memory_space<vmem>>) attributes {dimension_semantics = [#tpu.dimension_semantics<parallel>, #tpu.dimension_semantics<arbitrary>], iteration_bounds = array<i64: 1, 2>, scalar_prefetch = 0 : i64, scratch_operands = 3 : i64, tpu.core_type = #tpu.core_type<tc>, window_params = [{transform_indices = @transform_0, window_bounds = array<i64: 4, 8, 32>}, {pipeline_mode = #tpu.pipeline_mode<synchronous>, transform_indices = @transform_1, window_bounds = array<i64: 32, 512>}, {pipeline_mode = #tpu.pipeline_mode<synchronous>, transform_indices = @transform_2, window_bounds = array<i64: 128, 512>}, {pipeline_mode = #tpu.pipeline_mode<synchronous>, transform_indices = @transform_3, window_bounds = array<i64: 1, 512>}, {pipeline_mode = #tpu.pipeline_mode<synchronous>, transform_indices = @transform_4, window_bounds = array<i64: 128, 128>}, {pipeline_mode = #tpu.pipeline_mode<synchronous>, transform_indices = @transform_5, window_bounds = array<i64: 1, 128>}, {transform_indices = @transform_6, window_bounds = array<i64: 8, 128>}]} {
    %c0_i32 = arith.constant 0 : i32
    %0 = arith.cmpi eq, %arg1, %c0_i32 : i32
    %1 = arith.extui %0 : i1 to i32
    %c0_i32_0 = arith.constant 0 : i32
    %2 = arith.cmpi ne, %1, %c0_i32_0 : i32
    scf.if %2 {
      %cst_83 = arith.constant 0.000000e+00 : f32
      %138 = vector.broadcast %cst_83 : f32 to vector<8x128xf32>
      %c0_84 = arith.constant 0 : index
      %c0_85 = arith.constant 0 : index
      %139 = vector.load %arg9[%c0_84, %c0_85] : memref<8x128xf32, #tpu.memory_space<vmem>>, vector<8x128xf32>
      tpu.vector_store %arg9[%c0_84, %c0_85], %138 {strides = array<i32>} : memref<8x128xf32, #tpu.memory_space<vmem>>, vector<8x128xf32>,
      %cst_86 = arith.constant 0.000000e+00 : f32
      %140 = vector.broadcast %cst_86 : f32 to vector<8x128xf32>
      %c0_87 = arith.constant 0 : index
      %c0_88 = arith.constant 0 : index
      %141 = vector.load %arg10[%c0_87, %c0_88] : memref<8x128xf32, #tpu.memory_space<vmem>>, vector<8x128xf32>
      tpu.vector_store %arg10[%c0_87, %c0_88], %140 {strides = array<i32>} : memref<8x128xf32, #tpu.memory_space<vmem>>, vector<8x128xf32>,
    } else {
    }
    %c0 = arith.constant 0 : index
    %c0_1 = arith.constant 0 : index
    %c0_2 = arith.constant 0 : index
    %3 = vector.load %arg2[%c0, %c0_1, %c0_2] : memref<4x8x32xf32, #tpu.memory_space<vmem>>, vector<4x8x32xf32>
    %4 = vector.shape_cast %3 : vector<4x8x32xf32> to vector<32x32xf32>
    %c0_3 = arith.constant 0 : index
    %c0_4 = arith.constant 0 : index
    %5 = vector.load %arg3[%c0_3, %c0_4] : memref<32x512xf32, #tpu.memory_space<vmem>>, vector<32x512xf32>
    %cst = arith.constant dense<0.000000e+00> : vector<32x512xf32>
    %6 = tpu.matmul %4, %5, %cst {dimension_numbers = #tpu.dot_dimension_numbers<[1], [0], [0], [1], [0, 0, 1, 1], [], []>} : vector<32x32xf32>, vector<32x512xf32>, vector<32x512xf32> -> vector<32x512xf32>
    %c0_5 = arith.constant 0 : index
    %c0_6 = arith.constant 0 : index
    %7 = vector.load %arg5[%c0_5, %c0_6] : memref<1x512xf32, #tpu.memory_space<vmem>>, vector<1x512xf32>
    %8 = vector.broadcast %7 : vector<1x512xf32> to vector<32x512xf32>
    %9 = arith.addf %6, %8 : vector<32x512xf32>
    %c0_7 = arith.constant 0 : index
    %c0_8 = arith.constant 0 : index
    %10 = vector.load %arg11[%c0_7, %c0_8] : memref<32x512xf32, #tpu.memory_space<vmem>>, vector<32x512xf32>
    tpu.vector_store %arg11[%c0_7, %c0_8], %9 {strides = array<i32>} : memref<32x512xf32, #tpu.memory_space<vmem>>, vector<32x512xf32>,
    %c0_i32_9 = arith.constant 0 : i32
    %c8_i32 = arith.constant 8 : i32
    %11 = arith.muli %c0_i32_9, %c8_i32 : i32
    %12 = tpu.assume_multiple %11, 8 : i32
    %13 = arith.index_cast %12 : i32 to index
    %c0_10 = arith.constant 0 : index
    %14 = vector.load %arg11[%13, %c0_10] : memref<32x512xf32, #tpu.memory_space<vmem>>, vector<8x512xf32>
    %c0_11 = arith.constant 0 : index
    %c0_12 = arith.constant 0 : index
    %15 = vector.load %arg9[%c0_11, %c0_12] : memref<8x128xf32, #tpu.memory_space<vmem>>, vector<8x128xf32>
    %c0_13 = arith.constant 0 : index
    %c0_14 = arith.constant 0 : index
    %16 = vector.load %arg4[%c0_13, %c0_14] : memref<128x512xf32, #tpu.memory_space<vmem>>, vector<128x512xf32>
    %cst_15 = arith.constant dense<0.000000e+00> : vector<8x512xf32>
    %17 = tpu.matmul %15, %16, %cst_15 {dimension_numbers = #tpu.dot_dimension_numbers<[1], [0], [0], [1], [0, 0, 1, 1], [], []>} : vector<8x128xf32>, vector<128x512xf32>, vector<8x512xf32> -> vector<8x512xf32>
    %18 = arith.addf %14, %17 : vector<8x512xf32>
    %19 = math.tanh %18 : vector<8x512xf32>
    %20 = vector.extract_strided_slice %19 {offsets = [0, 0], sizes = [8, 128], strides = [1, 1]} : vector<8x512xf32> to vector<8x128xf32>
    %21 = vector.extract_strided_slice %19 {offsets = [0, 128], sizes = [8, 128], strides = [1, 1]} : vector<8x512xf32> to vector<8x128xf32>
    %22 = vector.extract_strided_slice %19 {offsets = [0, 256], sizes = [8, 128], strides = [1, 1]} : vector<8x512xf32> to vector<8x128xf32>
    %23 = vector.extract_strided_slice %19 {offsets = [0, 384], sizes = [8, 128], strides = [1, 1]} : vector<8x512xf32> to vector<8x128xf32>
    %cst_16 = arith.constant 1.000000e+00 : f32
    %24 = vector.broadcast %cst_16 : f32 to vector<8x128xf32>
    %25 = arith.addf %21, %24 : vector<8x128xf32>
    %c0_17 = arith.constant 0 : index
    %c0_18 = arith.constant 0 : index
    %26 = vector.load %arg10[%c0_17, %c0_18] : memref<8x128xf32, #tpu.memory_space<vmem>>, vector<8x128xf32>
    %27 = arith.mulf %25, %26 : vector<8x128xf32>
    %cst_19 = arith.constant 1.000000e+00 : f32
    %28 = vector.broadcast %cst_19 : f32 to vector<8x128xf32>
    %29 = arith.addf %20, %28 : vector<8x128xf32>
    %30 = arith.mulf %29, %22 : vector<8x128xf32>
    %31 = arith.addf %27, %30 : vector<8x128xf32>
    %cst_20 = arith.constant 5.000000e-01 : f32
    %32 = vector.broadcast %cst_20 : f32 to vector<8x128xf32>
    %33 = arith.mulf %32, %31 : vector<8x128xf32>
    %c0_21 = arith.constant 0 : index
    %c0_22 = arith.constant 0 : index
    %34 = vector.load %arg10[%c0_21, %c0_22] : memref<8x128xf32, #tpu.memory_space<vmem>>, vector<8x128xf32>
    tpu.vector_store %arg10[%c0_21, %c0_22], %33 {strides = array<i32>} : memref<8x128xf32, #tpu.memory_space<vmem>>, vector<8x128xf32>,
    %cst_23 = arith.constant 1.000000e+00 : f32
    %35 = vector.broadcast %cst_23 : f32 to vector<8x128xf32>
    %36 = arith.addf %23, %35 : vector<8x128xf32>
    %cst_24 = arith.constant 5.000000e-01 : f32
    %37 = vector.broadcast %cst_24 : f32 to vector<8x128xf32>
    %38 = arith.mulf %37, %36 : vector<8x128xf32>
    %39 = math.tanh %33 : vector<8x128xf32>
    %40 = arith.mulf %38, %39 : vector<8x128xf32>
    %c0_25 = arith.constant 0 : index
    %c0_26 = arith.constant 0 : index
    %41 = vector.load %arg9[%c0_25, %c0_26] : memref<8x128xf32, #tpu.memory_space<vmem>>, vector<8x128xf32>
    tpu.vector_store %arg9[%c0_25, %c0_26], %40 {strides = array<i32>} : memref<8x128xf32, #tpu.memory_space<vmem>>, vector<8x128xf32>,
    %c1_i32 = arith.constant 1 : i32
    %c8_i32_27 = arith.constant 8 : i32
    %42 = arith.muli %c1_i32, %c8_i32_27 : i32
    %43 = tpu.assume_multiple %42, 8 : i32
    %44 = arith.index_cast %43 : i32 to index
    %c0_28 = arith.constant 0 : index
    %45 = vector.load %arg11[%44, %c0_28] : memref<32x512xf32, #tpu.memory_space<vmem>>, vector<8x512xf32>
    %c0_29 = arith.constant 0 : index
    %c0_30 = arith.constant 0 : index
    %46 = vector.load %arg9[%c0_29, %c0_30] : memref<8x128xf32, #tpu.memory_space<vmem>>, vector<8x128xf32>
    %c0_31 = arith.constant 0 : index
    %c0_32 = arith.constant 0 : index
    %47 = vector.load %arg4[%c0_31, %c0_32] : memref<128x512xf32, #tpu.memory_space<vmem>>, vector<128x512xf32>
    %cst_33 = arith.constant dense<0.000000e+00> : vector<8x512xf32>
    %48 = tpu.matmul %46, %47, %cst_33 {dimension_numbers = #tpu.dot_dimension_numbers<[1], [0], [0], [1], [0, 0, 1, 1], [], []>} : vector<8x128xf32>, vector<128x512xf32>, vector<8x512xf32> -> vector<8x512xf32>
    %49 = arith.addf %45, %48 : vector<8x512xf32>
    %50 = math.tanh %49 : vector<8x512xf32>
    %51 = vector.extract_strided_slice %50 {offsets = [0, 0], sizes = [8, 128], strides = [1, 1]} : vector<8x512xf32> to vector<8x128xf32>
    %52 = vector.extract_strided_slice %50 {offsets = [0, 128], sizes = [8, 128], strides = [1, 1]} : vector<8x512xf32> to vector<8x128xf32>
    %53 = vector.extract_strided_slice %50 {offsets = [0, 256], sizes = [8, 128], strides = [1, 1]} : vector<8x512xf32> to vector<8x128xf32>
    %54 = vector.extract_strided_slice %50 {offsets = [0, 384], sizes = [8, 128], strides = [1, 1]} : vector<8x512xf32> to vector<8x128xf32>
    %cst_34 = arith.constant 1.000000e+00 : f32
    %55 = vector.broadcast %cst_34 : f32 to vector<8x128xf32>
    %56 = arith.addf %52, %55 : vector<8x128xf32>
    %c0_35 = arith.constant 0 : index
    %c0_36 = arith.constant 0 : index
    %57 = vector.load %arg10[%c0_35, %c0_36] : memref<8x128xf32, #tpu.memory_space<vmem>>, vector<8x128xf32>
    %58 = arith.mulf %56, %57 : vector<8x128xf32>
    %cst_37 = arith.constant 1.000000e+00 : f32
    %59 = vector.broadcast %cst_37 : f32 to vector<8x128xf32>
    %60 = arith.addf %51, %59 : vector<8x128xf32>
    %61 = arith.mulf %60, %53 : vector<8x128xf32>
    %62 = arith.addf %58, %61 : vector<8x128xf32>
    %cst_38 = arith.constant 5.000000e-01 : f32
    %63 = vector.broadcast %cst_38 : f32 to vector<8x128xf32>
    %64 = arith.mulf %63, %62 : vector<8x128xf32>
    %c0_39 = arith.constant 0 : index
    %c0_40 = arith.constant 0 : index
    %65 = vector.load %arg10[%c0_39, %c0_40] : memref<8x128xf32, #tpu.memory_space<vmem>>, vector<8x128xf32>
    tpu.vector_store %arg10[%c0_39, %c0_40], %64 {strides = array<i32>} : memref<8x128xf32, #tpu.memory_space<vmem>>, vector<8x128xf32>,
    %cst_41 = arith.constant 1.000000e+00 : f32
    %66 = vector.broadcast %cst_41 : f32 to vector<8x128xf32>
    %67 = arith.addf %54, %66 : vector<8x128xf32>
    %cst_42 = arith.constant 5.000000e-01 : f32
    %68 = vector.broadcast %cst_42 : f32 to vector<8x128xf32>
    %69 = arith.mulf %68, %67 : vector<8x128xf32>
    %70 = math.tanh %64 : vector<8x128xf32>
    %71 = arith.mulf %69, %70 : vector<8x128xf32>
    %c0_43 = arith.constant 0 : index
    %c0_44 = arith.constant 0 : index
    %72 = vector.load %arg9[%c0_43, %c0_44] : memref<8x128xf32, #tpu.memory_space<vmem>>, vector<8x128xf32>
    tpu.vector_store %arg9[%c0_43, %c0_44], %71 {strides = array<i32>} : memref<8x128xf32, #tpu.memory_space<vmem>>, vector<8x128xf32>,
    %c2_i32 = arith.constant 2 : i32
    %c8_i32_45 = arith.constant 8 : i32
    %73 = arith.muli %c2_i32, %c8_i32_45 : i32
    %74 = tpu.assume_multiple %73, 8 : i32
    %75 = arith.index_cast %74 : i32 to index
    %c0_46 = arith.constant 0 : index
    %76 = vector.load %arg11[%75, %c0_46] : memref<32x512xf32, #tpu.memory_space<vmem>>, vector<8x512xf32>
    %c0_47 = arith.constant 0 : index
    %c0_48 = arith.constant 0 : index
    %77 = vector.load %arg9[%c0_47, %c0_48] : memref<8x128xf32, #tpu.memory_space<vmem>>, vector<8x128xf32>
    %c0_49 = arith.constant 0 : index
    %c0_50 = arith.constant 0 : index
    %78 = vector.load %arg4[%c0_49, %c0_50] : memref<128x512xf32, #tpu.memory_space<vmem>>, vector<128x512xf32>
    %cst_51 = arith.constant dense<0.000000e+00> : vector<8x512xf32>
    %79 = tpu.matmul %77, %78, %cst_51 {dimension_numbers = #tpu.dot_dimension_numbers<[1], [0], [0], [1], [0, 0, 1, 1], [], []>} : vector<8x128xf32>, vector<128x512xf32>, vector<8x512xf32> -> vector<8x512xf32>
    %80 = arith.addf %76, %79 : vector<8x512xf32>
    %81 = math.tanh %80 : vector<8x512xf32>
    %82 = vector.extract_strided_slice %81 {offsets = [0, 0], sizes = [8, 128], strides = [1, 1]} : vector<8x512xf32> to vector<8x128xf32>
    %83 = vector.extract_strided_slice %81 {offsets = [0, 128], sizes = [8, 128], strides = [1, 1]} : vector<8x512xf32> to vector<8x128xf32>
    %84 = vector.extract_strided_slice %81 {offsets = [0, 256], sizes = [8, 128], strides = [1, 1]} : vector<8x512xf32> to vector<8x128xf32>
    %85 = vector.extract_strided_slice %81 {offsets = [0, 384], sizes = [8, 128], strides = [1, 1]} : vector<8x512xf32> to vector<8x128xf32>
    %cst_52 = arith.constant 1.000000e+00 : f32
    %86 = vector.broadcast %cst_52 : f32 to vector<8x128xf32>
    %87 = arith.addf %83, %86 : vector<8x128xf32>
    %c0_53 = arith.constant 0 : index
    %c0_54 = arith.constant 0 : index
    %88 = vector.load %arg10[%c0_53, %c0_54] : memref<8x128xf32, #tpu.memory_space<vmem>>, vector<8x128xf32>
    %89 = arith.mulf %87, %88 : vector<8x128xf32>
    %cst_55 = arith.constant 1.000000e+00 : f32
    %90 = vector.broadcast %cst_55 : f32 to vector<8x128xf32>
    %91 = arith.addf %82, %90 : vector<8x128xf32>
    %92 = arith.mulf %91, %84 : vector<8x128xf32>
    %93 = arith.addf %89, %92 : vector<8x128xf32>
    %cst_56 = arith.constant 5.000000e-01 : f32
    %94 = vector.broadcast %cst_56 : f32 to vector<8x128xf32>
    %95 = arith.mulf %94, %93 : vector<8x128xf32>
    %c0_57 = arith.constant 0 : index
    %c0_58 = arith.constant 0 : index
    %96 = vector.load %arg10[%c0_57, %c0_58] : memref<8x128xf32, #tpu.memory_space<vmem>>, vector<8x128xf32>
    tpu.vector_store %arg10[%c0_57, %c0_58], %95 {strides = array<i32>} : memref<8x128xf32, #tpu.memory_space<vmem>>, vector<8x128xf32>,
    %cst_59 = arith.constant 1.000000e+00 : f32
    %97 = vector.broadcast %cst_59 : f32 to vector<8x128xf32>
    %98 = arith.addf %85, %97 : vector<8x128xf32>
    %cst_60 = arith.constant 5.000000e-01 : f32
    %99 = vector.broadcast %cst_60 : f32 to vector<8x128xf32>
    %100 = arith.mulf %99, %98 : vector<8x128xf32>
    %101 = math.tanh %95 : vector<8x128xf32>
    %102 = arith.mulf %100, %101 : vector<8x128xf32>
    %c0_61 = arith.constant 0 : index
    %c0_62 = arith.constant 0 : index
    %103 = vector.load %arg9[%c0_61, %c0_62] : memref<8x128xf32, #tpu.memory_space<vmem>>, vector<8x128xf32>
    tpu.vector_store %arg9[%c0_61, %c0_62], %102 {strides = array<i32>} : memref<8x128xf32, #tpu.memory_space<vmem>>, vector<8x128xf32>,
    %c3_i32 = arith.constant 3 : i32
    %c8_i32_63 = arith.constant 8 : i32
    %104 = arith.muli %c3_i32, %c8_i32_63 : i32
    %105 = tpu.assume_multiple %104, 8 : i32
    %106 = arith.index_cast %105 : i32 to index
    %c0_64 = arith.constant 0 : index
    %107 = vector.load %arg11[%106, %c0_64] : memref<32x512xf32, #tpu.memory_space<vmem>>, vector<8x512xf32>
    %c0_65 = arith.constant 0 : index
    %c0_66 = arith.constant 0 : index
    %108 = vector.load %arg9[%c0_65, %c0_66] : memref<8x128xf32, #tpu.memory_space<vmem>>, vector<8x128xf32>
    %c0_67 = arith.constant 0 : index
    %c0_68 = arith.constant 0 : index
    %109 = vector.load %arg4[%c0_67, %c0_68] : memref<128x512xf32, #tpu.memory_space<vmem>>, vector<128x512xf32>
    %cst_69 = arith.constant dense<0.000000e+00> : vector<8x512xf32>
    %110 = tpu.matmul %108, %109, %cst_69 {dimension_numbers = #tpu.dot_dimension_numbers<[1], [0], [0], [1], [0, 0, 1, 1], [], []>} : vector<8x128xf32>, vector<128x512xf32>, vector<8x512xf32> -> vector<8x512xf32>
    %111 = arith.addf %107, %110 : vector<8x512xf32>
    %112 = math.tanh %111 : vector<8x512xf32>
    %113 = vector.extract_strided_slice %112 {offsets = [0, 0], sizes = [8, 128], strides = [1, 1]} : vector<8x512xf32> to vector<8x128xf32>
    %114 = vector.extract_strided_slice %112 {offsets = [0, 128], sizes = [8, 128], strides = [1, 1]} : vector<8x512xf32> to vector<8x128xf32>
    %115 = vector.extract_strided_slice %112 {offsets = [0, 256], sizes = [8, 128], strides = [1, 1]} : vector<8x512xf32> to vector<8x128xf32>
    %116 = vector.extract_strided_slice %112 {offsets = [0, 384], sizes = [8, 128], strides = [1, 1]} : vector<8x512xf32> to vector<8x128xf32>
    %cst_70 = arith.constant 1.000000e+00 : f32
    %117 = vector.broadcast %cst_70 : f32 to vector<8x128xf32>
    %118 = arith.addf %114, %117 : vector<8x128xf32>
    %c0_71 = arith.constant 0 : index
    %c0_72 = arith.constant 0 : index
    %119 = vector.load %arg10[%c0_71, %c0_72] : memref<8x128xf32, #tpu.memory_space<vmem>>, vector<8x128xf32>
    %120 = arith.mulf %118, %119 : vector<8x128xf32>
    %cst_73 = arith.constant 1.000000e+00 : f32
    %121 = vector.broadcast %cst_73 : f32 to vector<8x128xf32>
    %122 = arith.addf %113, %121 : vector<8x128xf32>
    %123 = arith.mulf %122, %115 : vector<8x128xf32>
    %124 = arith.addf %120, %123 : vector<8x128xf32>
    %cst_74 = arith.constant 5.000000e-01 : f32
    %125 = vector.broadcast %cst_74 : f32 to vector<8x128xf32>
    %126 = arith.mulf %125, %124 : vector<8x128xf32>
    %c0_75 = arith.constant 0 : index
    %c0_76 = arith.constant 0 : index
    %127 = vector.load %arg10[%c0_75, %c0_76] : memref<8x128xf32, #tpu.memory_space<vmem>>, vector<8x128xf32>
    tpu.vector_store %arg10[%c0_75, %c0_76], %126 {strides = array<i32>} : memref<8x128xf32, #tpu.memory_space<vmem>>, vector<8x128xf32>,
    %cst_77 = arith.constant 1.000000e+00 : f32
    %128 = vector.broadcast %cst_77 : f32 to vector<8x128xf32>
    %129 = arith.addf %116, %128 : vector<8x128xf32>
    %cst_78 = arith.constant 5.000000e-01 : f32
    %130 = vector.broadcast %cst_78 : f32 to vector<8x128xf32>
    %131 = arith.mulf %130, %129 : vector<8x128xf32>
    %132 = math.tanh %126 : vector<8x128xf32>
    %133 = arith.mulf %131, %132 : vector<8x128xf32>
    %c0_79 = arith.constant 0 : index
    %c0_80 = arith.constant 0 : index
    %134 = vector.load %arg9[%c0_79, %c0_80] : memref<8x128xf32, #tpu.memory_space<vmem>>, vector<8x128xf32>
    tpu.vector_store %arg9[%c0_79, %c0_80], %133 {strides = array<i32>} : memref<8x128xf32, #tpu.memory_space<vmem>>, vector<8x128xf32>,
    %c4_i32 = arith.constant 4 : i32
    %c1_i32_81 = arith.constant 1 : i32
    %135 = arith.cmpi eq, %arg1, %c1_i32_81 : i32
    %136 = arith.extui %135 : i1 to i32
    %c0_i32_82 = arith.constant 0 : i32
    %137 = arith.cmpi ne, %136, %c0_i32_82 : i32
    scf.if %137 {
      %c0_83 = arith.constant 0 : index
      %c0_84 = arith.constant 0 : index
      %138 = vector.load %arg9[%c0_83, %c0_84] : memref<8x128xf32, #tpu.memory_space<vmem>>, vector<8x128xf32>
      %c0_85 = arith.constant 0 : index
      %c0_86 = arith.constant 0 : index
      %139 = vector.load %arg6[%c0_85, %c0_86] : memref<128x128xf32, #tpu.memory_space<vmem>>, vector<128x128xf32>
      %cst_87 = arith.constant dense<0.000000e+00> : vector<8x128xf32>
      %140 = tpu.matmul %138, %139, %cst_87 {dimension_numbers = #tpu.dot_dimension_numbers<[1], [0], [0], [1], [0, 0, 1, 1], [], []>} : vector<8x128xf32>, vector<128x128xf32>, vector<8x128xf32> -> vector<8x128xf32>
      %c0_88 = arith.constant 0 : index
      %c0_89 = arith.constant 0 : index
      %141 = vector.load %arg7[%c0_88, %c0_89] : memref<1x128xf32, #tpu.memory_space<vmem>>, vector<1x128xf32>
      %142 = vector.broadcast %141 : vector<1x128xf32> to vector<8x128xf32>
      %143 = arith.addf %140, %142 : vector<8x128xf32>
      %c0_90 = arith.constant 0 : index
      %c0_91 = arith.constant 0 : index
      %144 = vector.load %arg8[%c0_90, %c0_91] : memref<8x128xf32, #tpu.memory_space<vmem>>, vector<8x128xf32>
      tpu.vector_store %arg8[%c0_90, %c0_91], %143 {strides = array<i32>} : memref<8x128xf32, #tpu.memory_space<vmem>>, vector<8x128xf32>,
    } else {
    }
    return
  }
  func.func @transform_0(%arg0: i32, %arg1: i32) -> (i32, i32, i32) {
    %c0_i32 = arith.constant 0 : i32
    %c0_i32_0 = arith.constant 0 : i32
    return %arg1, %arg0, %c0_i32 : i32, i32, i32
  }
  func.func @transform_1(%arg0: i32, %arg1: i32) -> (i32, i32) {
    %c0_i32 = arith.constant 0 : i32
    %c0_i32_0 = arith.constant 0 : i32
    %c0_i32_1 = arith.constant 0 : i32
    return %c0_i32, %c0_i32_0 : i32, i32
  }
  func.func @transform_2(%arg0: i32, %arg1: i32) -> (i32, i32) {
    %c0_i32 = arith.constant 0 : i32
    %c0_i32_0 = arith.constant 0 : i32
    %c0_i32_1 = arith.constant 0 : i32
    return %c0_i32, %c0_i32_0 : i32, i32
  }
  func.func @transform_3(%arg0: i32, %arg1: i32) -> (i32, i32) {
    %c0_i32 = arith.constant 0 : i32
    %c0_i32_0 = arith.constant 0 : i32
    %c0_i32_1 = arith.constant 0 : i32
    return %c0_i32, %c0_i32_0 : i32, i32
  }
  func.func @transform_4(%arg0: i32, %arg1: i32) -> (i32, i32) {
    %c0_i32 = arith.constant 0 : i32
    %c0_i32_0 = arith.constant 0 : i32
    %c0_i32_1 = arith.constant 0 : i32
    return %c0_i32, %c0_i32_0 : i32, i32
  }
  func.func @transform_5(%arg0: i32, %arg1: i32) -> (i32, i32) {
    %c0_i32 = arith.constant 0 : i32
    %c0_i32_0 = arith.constant 0 : i32
    %c0_i32_1 = arith.constant 0 : i32
    return %c0_i32, %c0_i32_0 : i32, i32
  }
  func.func @transform_6(%arg0: i32, %arg1: i32) -> (i32, i32) {
    %c0_i32 = arith.constant 0 : i32
    %c0_i32_0 = arith.constant 0 : i32
    return %arg0, %c0_i32 : i32, i32
  }
}

</mosaic_0001>

<llo_original>
// kernel: tpu_custom_call.1
$region0: #{tpu_custom_call.1}
  #allocation0 [shape = 'u32[]', space=smem, size = 0x4, offset = 0x4, fixed_abs, tag = 'smem constant byte address 0x4 - core index']
  #allocation1 [shape = 'u32[144,128]{1,0:T(1,128)}', space=vmem, size = 0x12000, scoped, tag = 'internal scratch']
  #allocation2 [shape = 'f32[8,128]{1,0:T(8,128)}', space=vmem, size = 0x1000, scoped, tag = 'scratch operand']
  #allocation3 [shape = 'f32[8,128]{1,0:T(8,128)}', space=vmem, size = 0x1000, scoped, tag = 'scratch operand']
  #allocation4 [shape = 'f32[32,512]{1,0:T(8,128)}', space=vmem, size = 0x10000, scoped, tag = 'scratch operand']
  %s0 = inlined_call_operand.hbm [shape: f32[8,8,32], index: 0, kind: input, shape index: {}]
  %s1 = inlined_call_operand.hbm [shape: f32[32,512], index: 1, kind: input, shape index: {}]
  %s2 = inlined_call_operand.hbm [shape: f32[128,512], index: 2, kind: input, shape index: {}]
  %s3 = inlined_call_operand.vmem [shape: f32[1,512], index: 3, kind: input, shape index: {}]
  %s4 = inlined_call_operand.hbm [shape: f32[128,128], index: 4, kind: input, shape index: {}]
  %s5 = inlined_call_operand.vmem [shape: f32[1,128], index: 5, kind: input, shape index: {}]
  %s6 = inlined_call_operand.hbm [shape: f32[8,128], index: 6, kind: output, shape index: {}]
  %s7 = sld [smem:[#allocation0]]
  $region81: #{tpu_custom_call.1} parent=0
    _
  %s9 = ssub.s32 1, %s7
  %s10 = scalar_select 0, %s9, %s7
  $region1: #{tpu_custom_call.1} parent=0
    #allocation5 [shape = 'u8[32768]{0}', space=vmem, size = 0x8000, scoped, tag = 'input window, operand 0']
    #allocation6 [shape = 's32[2]{0}', space=sflag, size = 0x8, scoped, tag = 'scoped memory for tpu_custom_call.1']
    #allocation7 [shape = 's32[2]{0}', space=sflag, size = 0x8, scoped, tag = 'scoped memory for tpu_custom_call.1']
    #allocation8 [shape = 'u8[65536]{0}', space=vmem, size = 0x10000, scoped, tag = 'input window, operand 1, single buffered']
    #allocation9 [shape = 's32[1]{0}', space=sflag, size = 0x4, scoped, tag = 'scoped memory for tpu_custom_call.1']
    #allocation10 [shape = 'u8[262144]{0}', space=vmem, size = 0x40000, scoped, tag = 'input window, operand 2, single buffered']
    #allocation11 [shape = 'u8[65536]{0}', space=vmem, size = 0x10000, scoped, tag = 'input window, operand 4, single buffered']
    #allocation12 [shape = 's32[1]{0}', space=sflag, size = 0x4, scoped, tag = 'scoped memory for tpu_custom_call.1']
    #allocation13 [shape = 'u8[4096]{0}', space=vmem, size = 0x1000, scoped, tag = 'output window, operand 0, single buffered']
    %11 = vsyncpa [#allocation6], 0
    %s12 = scalar_lea.sflag [#allocation6], 1
    %13 = vsyncpa %s12, 0
    %14 = vsyncpa [#allocation9], 0
    %15 = vsyncpa [#allocation12], 0
    %16 = vsyncpa [#allocation7], 0
    loop: start=0, step=1, limit=4
    $region2: #{tpu_custom_call.1} parent=1 // loop_pre_header
      _
    $region3: #{tpu_custom_call.1} parent=1 // loop_header
      %s18 = sphi 0, %s22
      %p19 = scmp.ge.s32.totalorder %s18, 4
      %s25 = sphi 0, %s37
      %s26 = sphi 0, %s33
      %s27 = sphi 0, %s25
      %s28 = sphi 0, %s26
      %s29 = sphi 0, %s27
      %s30 = sphi 0, %s28
      %s42 = sphi 0, %s44
      %s45 = sphi 0, %s42
      %s46 = sphi 0, %s45
      %s62 = sphi 0, %s46
      %s66 = sphi 0, %s66
      %s68 = sphi 0, %s66
      %s69 = sphi 0, %s68
      %s83 = sphi 0, %s69
      %s87 = sphi 0, %s87
      %s89 = sphi 0, %s87
      %s90 = sphi 0, %s89
      %s104 = sphi 0, %s90
      %s108 = sphi 0, %s108
      %s110 = sphi 0, %s108
      %s111 = sphi 0, %s110
      %s125 = sphi 0, %s111
      %s129 = sphi 0, %s129
      %s131 = sphi 0, %s129
      %s132 = sphi 0, %s131
      %s146 = sphi 0, %s132
      %s150 = sphi 0, %s150
      %s152 = sphi 0, %s150
      %s153 = sphi 0, %s152
      %s167 = sphi 0, %s153
      %s173 = sphi 0, %s175
      %s176 = sphi 0, %s173
      %s177 = sphi 0, %s176
      %s193 = sphi 0, %s177
    $region4: #{tpu_custom_call.1} parent=1 // loop_header_branch
      %21 = sbr.rel (%p19) target = $region8
    $region5: #{tpu_custom_call.1} parent=1 // loop_body
      %s23 = ssub.s32 %s18, 1
      %s24 = ssub.s32 %s18, 2
      %s31 = sadd.s32 1, %s26
      %p32 = scmp.ge.s32.totalorder %s31, 2
      %s33 = scalar_select %p32, 0, %s31
      %s34 = sadd.s32 1, %s25
      %s35 = scalar_select %p32, %s34, %s25
      %p36 = scmp.ge.s32.totalorder %s35, 1
      %s37 = scalar_select %p36, 0, %s35
      %s38 = ssub.s32 %s26, %s33
      %s39 = ssub.s32 %s25, %s37
      %s40 = sor.u32 %s38, %s39
      %p41 = scmp.eq.s32.totalorder %s40, 0
      %s43 = sadd.s32 %s42, 1
      %s44 = scalar_select %p41, %s42, %s43
      %p47 = pneg %p41
      %p48 = scmp.eq.s32.totalorder %s18, 1
      %p49 = por %p47, %p48
      %p50 = scmp.ne.s32.totalorder %s42, %s45
      %p51 = scmp.eq.s32.totalorder %s18, 0
      %p52 = por %p50, %p51
      %p53 = scmp.ne.s32.totalorder %s42, %s45
      %p54 = scmp.eq.s32.totalorder %s23, 1
      %p55 = por %p53, %p54
      %p56 = scmp.ne.s32.totalorder %s45, %s46
      %p57 = scmp.eq.s32.totalorder %s23, 0
      %p58 = por %p56, %p57
      %p59 = scmp.ne.s32.totalorder %s45, %s46
      %p60 = scmp.eq.s32.totalorder %s24, 1
      %p61 = por %p59, %p60
      %p63 = scmp.ne.s32.totalorder %s46, %s62
      %p64 = scmp.eq.s32.totalorder %s24, 0
      %p65 = por %p63, %p64
      %s67 = sadd.s32 %s66, 1
      %p70 = scmp.eq.s32.totalorder %s18, 1
      %p71 = scmp.ne.s32.totalorder %s66, %s68
      %p72 = scmp.eq.s32.totalorder %s18, 0
      %p73 = por %p71, %p72
      %p74 = scmp.ne.s32.totalorder %s66, %s68
      %p75 = scmp.eq.s32.totalorder %s23, 1
      %p76 = por %p74, %p75
      %p77 = scmp.ne.s32.totalorder %s68, %s69
      %p78 = scmp.eq.s32.totalorder %s23, 0
      %p79 = por %p77, %p78
      %p80 = scmp.ne.s32.totalorder %s68, %s69
      %p81 = scmp.eq.s32.totalorder %s24, 1
      %p82 = por %p80, %p81
      %p84 = scmp.ne.s32.totalorder %s69, %s83
      %p85 = scmp.eq.s32.totalorder %s24, 0
      %p86 = por %p84, %p85
      %s88 = sadd.s32 %s87, 1
      %p91 = scmp.eq.s32.totalorder %s18, 1
      %p92 = scmp.ne.s32.totalorder %s87, %s89
      %p93 = scmp.eq.s32.totalorder %s18, 0
      %p94 = por %p92, %p93
      %p95 = scmp.ne.s32.totalorder %s87, %s89
      %p96 = scmp.eq.s32.totalorder %s23, 1
      %p97 = por %p95, %p96
      %p98 = scmp.ne.s32.totalorder %s89, %s90
      %p99 = scmp.eq.s32.totalorder %s23, 0
      %p100 = por %p98, %p99
      %p101 = scmp.ne.s32.totalorder %s89, %s90
      %p102 = scmp.eq.s32.totalorder %s24, 1
      %p103 = por %p101, %p102
      %p105 = scmp.ne.s32.totalorder %s90, %s104
      %p106 = scmp.eq.s32.totalorder %s24, 0
      %p107 = por %p105, %p106
      %s109 = sadd.s32 %s108, 1
      %p112 = scmp.eq.s32.totalorder %s18, 1
      %p113 = scmp.ne.s32.totalorder %s108, %s110
      %p114 = scmp.eq.s32.totalorder %s18, 0
      %p115 = por %p113, %p114
      %p116 = scmp.ne.s32.totalorder %s108, %s110
      %p117 = scmp.eq.s32.totalorder %s23, 1
      %p118 = por %p116, %p117
      %p119 = scmp.ne.s32.totalorder %s110, %s111
      %p120 = scmp.eq.s32.totalorder %s23, 0
      %p121 = por %p119, %p120
      %p122 = scmp.ne.s32.totalorder %s110, %s111
      %p123 = scmp.eq.s32.totalorder %s24, 1
      %p124 = por %p122, %p123
      %p126 = scmp.ne.s32.totalorder %s111, %s125
      %p127 = scmp.eq.s32.totalorder %s24, 0
      %p128 = por %p126, %p127
      %s130 = sadd.s32 %s129, 1
      %p133 = scmp.eq.s32.totalorder %s18, 1
      %p134 = scmp.ne.s32.totalorder %s129, %s131
      %p135 = scmp.eq.s32.totalorder %s18, 0
      %p136 = por %p134, %p135
      %p137 = scmp.ne.s32.totalorder %s129, %s131
      %p138 = scmp.eq.s32.totalorder %s23, 1
      %p139 = por %p137, %p138
      %p140 = scmp.ne.s32.totalorder %s131, %s132
      %p141 = scmp.eq.s32.totalorder %s23, 0
      %p142 = por %p140, %p141
      %p143 = scmp.ne.s32.totalorder %s131, %s132
      %p144 = scmp.eq.s32.totalorder %s24, 1
      %p145 = por %p143, %p144
      %p147 = scmp.ne.s32.totalorder %s132, %s146
      %p148 = scmp.eq.s32.totalorder %s24, 0
      %p149 = por %p147, %p148
      %s151 = sadd.s32 %s150, 1
      %p154 = scmp.eq.s32.totalorder %s18, 1
      %p155 = scmp.ne.s32.totalorder %s150, %s152
      %p156 = scmp.eq.s32.totalorder %s18, 0
      %p157 = por %p155, %p156
      %p158 = scmp.ne.s32.totalorder %s150, %s152
      %p159 = scmp.eq.s32.totalorder %s23, 1
      %p160 = por %p158, %p159
      %p161 = scmp.ne.s32.totalorder %s152, %s153
      %p162 = scmp.eq.s32.totalorder %s23, 0
      %p163 = por %p161, %p162
      %p164 = scmp.ne.s32.totalorder %s152, %s153
      %p165 = scmp.eq.s32.totalorder %s24, 1
      %p166 = por %p164, %p165
      %p168 = scmp.ne.s32.totalorder %s153, %s167
      %p169 = scmp.eq.s32.totalorder %s24, 0
      %p170 = por %p168, %p169
      %s171 = ssub.s32 %s25, %s37
      %p172 = scmp.eq.s32.totalorder %s171, 0
      %s174 = sadd.s32 %s173, 1
      %s175 = scalar_select %p172, %s173, %s174
      %p178 = pneg %p172
      %p179 = scmp.eq.s32.totalorder %s18, 1
      %p180 = por %p178, %p179
      %p181 = scmp.ne.s32.totalorder %s173, %s176
      %p182 = scmp.eq.s32.totalorder %s18, 0
      %p183 = por %p181, %p182
      %p184 = scmp.ne.s32.totalorder %s173, %s176
      %p185 = scmp.eq.s32.totalorder %s23, 1
      %p186 = por %p184, %p185
      %p187 = scmp.ne.s32.totalorder %s176, %s177
      %p188 = scmp.eq.s32.totalorder %s23, 0
      %p189 = por %p187, %p188
      %p190 = scmp.ne.s32.totalorder %s176, %s177
      %p191 = scmp.eq.s32.totalorder %s24, 1
      %p192 = por %p190, %p191
      %p194 = scmp.ne.s32.totalorder %s177, %s193
      %p195 = scmp.eq.s32.totalorder %s24, 0
      %p196 = por %p194, %p195
      %p197 = scmp.le.s32.totalorder 1, %s18
      %p198 = scmp.lt.s32.totalorder %s18, 3
      %p199 = pnand %p197, %p198
      %p200 = pneg %p199
      // Predicated region
      $region9: #{tpu_custom_call.1} parent=5 // pred_check
        _
      $region10: #{tpu_custom_call.1} parent=5 // pred_check_branch
        %202 = sbr.rel (%p199) target = $region12
      $region11: #{tpu_custom_call.1} parent=5 // pred_region
        %s203 = ssub.s32 %s18, 1
        // Predicated region
        $region13: #{tpu_custom_call.1} parent=11 // pred_check
          %p204 = pneg %p79
        $region14: #{tpu_custom_call.1} parent=11 // pred_check_branch
          %206 = sbr.rel (%p204) target = $region16
        $region15: #{tpu_custom_call.1} parent=11 // pred_region
          %s208 = ssub.s32 2048, 2048
          %209 = vsyncadd [#allocation9], %s208
          %s210 = sshll.u32 [#allocation8], 4
          %s211 = int_to_ptr.vmem [resolvable:$true] %s210
          %216 = dma.hbm_to_vmem [thread:$0]  %s1, 2048, %s211, [#allocation9], 512, 512, 32
        $region16: #{tpu_custom_call.1} parent=11 // pred_fallthru
          _
        // Predicated region
        $region17: #{tpu_custom_call.1} parent=11 // pred_check
          %p217 = pneg %p100
        $region18: #{tpu_custom_call.1} parent=11 // pred_check_branch
          %219 = sbr.rel (%p217) target = $region20
        $region19: #{tpu_custom_call.1} parent=11 // pred_region
          %s221 = ssub.s32 8192, 8192
          %222 = vsyncadd [#allocation9], %s221
          %s223 = sshll.u32 [#allocation10], 4
          %s224 = int_to_ptr.vmem [resolvable:$true] %s223
          %229 = dma.hbm_to_vmem [thread:$0]  %s2, 8192, %s224, [#allocation9], 512, 512, 32
        $region20: #{tpu_custom_call.1} parent=11 // pred_fallthru
          _
        // Predicated region
        $region21: #{tpu_custom_call.1} parent=11 // pred_check
          %p230 = pneg %p121
        $region22: #{tpu_custom_call.1} parent=11 // pred_check_branch
          %232 = sbr.rel (%p230) target = $region24
        $region23: #{tpu_custom_call.1} parent=11 // pred_region
          _
        $region24: #{tpu_custom_call.1} parent=11 // pred_fallthru
          _
        // Predicated region
        $region25: #{tpu_custom_call.1} parent=11 // pred_check
          %p233 = pneg %p142
        $region26: #{tpu_custom_call.1} parent=11 // pred_check_branch
          %235 = sbr.rel (%p233) target = $region28
        $region27: #{tpu_custom_call.1} parent=11 // pred_region
          %s237 = ssub.s32 2048, 2048
          %238 = vsyncadd [#allocation12], %s237
          %s239 = sshll.u32 [#allocation11], 4
          %s240 = int_to_ptr.vmem [resolvable:$true] %s239
          %245 = dma.hbm_to_vmem [thread:$0]  %s4, 2048, %s240, [#allocation12], 128, 128, 8
        $region28: #{tpu_custom_call.1} parent=11 // pred_fallthru
          _
        // Predicated region
        $region29: #{tpu_custom_call.1} parent=11 // pred_check
          %p246 = pneg %p163
        $region30: #{tpu_custom_call.1} parent=11 // pred_check_branch
          %248 = sbr.rel (%p246) target = $region32
        $region31: #{tpu_custom_call.1} parent=11 // pred_region
          _
        $region32: #{tpu_custom_call.1} parent=11 // pred_fallthru
          _
      $region12: #{tpu_custom_call.1} parent=5 // pred_fallthru
        _
      %p249 = scmp.lt.s32.totalorder %s18, 2
      // Predicated region
      $region33: #{tpu_custom_call.1} parent=5 // pred_check
        %p250 = pneg %p249
      $region34: #{tpu_custom_call.1} parent=5 // pred_check_branch
        %252 = sbr.rel (%p250) target = $region36
      $region35: #{tpu_custom_call.1} parent=5 // pred_region
        // Predicated region
        $region37: #{tpu_custom_call.1} parent=35 // pred_check
          %p253 = pneg %p52
        $region38: #{tpu_custom_call.1} parent=35 // pred_check_branch
          %255 = sbr.rel (%p253) target = $region40
        $region39: #{tpu_custom_call.1} parent=35 // pred_region
          %s256 = sand.u32 %s42, 1
          %s257 = scalar_lea.sflag [#allocation6], %s256
          %s258 = sand.u32 %s42, 1
          %s259 = smul.addr %s258, 32
          %s260 = scalar_lea.vmem [#allocation5], %s259
          %s261 = smul.u32 4, %s26
          %s263 = ssub.s32 512, 512
          %264 = vsyncadd %s257, %s263
          %s265 = sadd.s32 %s25, %s261
          %s266 = smul.addr %s265, 128
          %s267 = scalar_lea.hbm %s0, %s266
          %s268 = sshll.u32 %s260, 4
          %s269 = int_to_ptr.vmem [resolvable:$true] %s268
          %274 = dma.hbm_to_vmem [thread:$0]  %s267, 512, %s269, %s257, 128, 128, 8
        $region40: #{tpu_custom_call.1} parent=35 // pred_fallthru
          _
      $region36: #{tpu_custom_call.1} parent=5 // pred_fallthru
        _
      %p275 = scmp.le.s32.totalorder 1, %s18
      %p276 = scmp.lt.s32.totalorder %s18, 3
      %p277 = pnand %p275, %p276
      %p278 = pneg %p277
      // Predicated region
      $region41: #{tpu_custom_call.1} parent=5 // pred_check
        _
      $region42: #{tpu_custom_call.1} parent=5 // pred_check_branch
        %280 = sbr.rel (%p277) target = $region44
      $region43: #{tpu_custom_call.1} parent=5 // pred_region
        %s281 = ssub.s32 %s18, 1
        %s282 = sand.u32 %s45, 1
        %s283 = scalar_lea.sflag [#allocation6], %s282
        %s284 = sand.u32 %s45, 1
        %s285 = smul.addr %s284, 32
        %s286 = scalar_lea.vmem [#allocation5], %s285
        // Predicated region
        $region45: #{tpu_custom_call.1} parent=43 // pred_check
          %p287 = pneg %p58
        $region46: #{tpu_custom_call.1} parent=43 // pred_check_branch
          %289 = sbr.rel (%p287) target = $region48
        $region47: #{tpu_custom_call.1} parent=43 // pred_region
          %290 = dma.done %s283, 512
        $region48: #{tpu_custom_call.1} parent=43 // pred_fallthru
          _
        // Predicated region
        $region49: #{tpu_custom_call.1} parent=43 // pred_check
          %p291 = pneg %p79
        $region50: #{tpu_custom_call.1} parent=43 // pred_check_branch
          %293 = sbr.rel (%p291) target = $region52
        $region51: #{tpu_custom_call.1} parent=43 // pred_region
          %294 = dma.done [#allocation9], 2048
        $region52: #{tpu_custom_call.1} parent=43 // pred_fallthru
          _
        // Predicated region
        $region53: #{tpu_custom_call.1} parent=43 // pred_check
          %p295 = pneg %p100
        $region54: #{tpu_custom_call.1} parent=43 // pred_check_branch
          %297 = sbr.rel (%p295) target = $region56
        $region55: #{tpu_custom_call.1} parent=43 // pred_region
          %298 = dma.done [#allocation9], 8192
        $region56: #{tpu_custom_call.1} parent=43 // pred_fallthru
          _
        // Predicated region
        $region57: #{tpu_custom_call.1} parent=43 // pred_check
          %p299 = pneg %p142
        $region58: #{tpu_custom_call.1} parent=43 // pred_check_branch
          %301 = sbr.rel (%p299) target = $region60
        $region59: #{tpu_custom_call.1} parent=43 // pred_region
          %302 = dma.done [#allocation12], 2048
        $region60: #{tpu_custom_call.1} parent=43 // pred_fallthru
          _
        %s303 = sand.u32 %s45, 1
        %s304 = scalar_lea.sflag [#allocation6], %s303
        %s305 = sand.u32 %s45, 1
        %s306 = smul.addr %s305, 32
        %s307 = scalar_lea.vmem [#allocation5], %s306
        %p308 = pneg %p58
        %p309 = pneg %p55
        %p310 = pneg %p79
        %p311 = pneg %p76
        %p312 = pneg %p100
        %p313 = pneg %p97
        %p314 = pneg %p121
        %p315 = pneg %p118
        %p316 = pneg %p142
        %p317 = pneg %p139
        %p318 = pneg %p163
        %p319 = pneg %p160
        %p320 = pneg %p189
        %p321 = pneg %p186
        %s322 = smul.u32 4, %s28
        %p323 = scmp.eq.s32.totalorder %s28, 0
        // Predicated region
        $region61: #{tpu_custom_call.1} parent=43 // pred_check
          %p324 = pneg %p323
        $region62: #{tpu_custom_call.1} parent=43 // pred_check_branch
          %326 = sbr.rel (%p324) target = $region64
        $region63: #{tpu_custom_call.1} parent=43 // pred_region
          %327 = vst [vmem:[#allocation2] sm:$0xff] 0.0
          %328 = vst [vmem:[#allocation3] sm:$0xff] 0.0
        $region64: #{tpu_custom_call.1} parent=43 // pred_fallthru
          _
        %v329 = vld [vmem:[%s286] sm:$0xff]
        %v330 = vld [vmem:[%s286 + $0x8] sm:$0xff]
        %v331 = vld [vmem:[%s286 + $0x10] sm:$0xff]
        %v332 = vld [vmem:[%s286 + $0x18] sm:$0xff]
        %v333 = vld [vmem:[#allocation8] sm:$0xff]
        %v334 = vld [vmem:[#allocation8 + $0x8] sm:$0xff]
        %v335 = vld [vmem:[#allocation8 + $0x10] sm:$0xff]
        %v336 = vld [vmem:[#allocation8 + $0x18] sm:$0xff]
        %v337 = vld [vmem:[#allocation8 + $0x20] sm:$0xff]
        %v338 = vld [vmem:[#allocation8 + $0x28] sm:$0xff]
        %v339 = vld [vmem:[#allocation8 + $0x30] sm:$0xff]
        %v340 = vld [vmem:[#allocation8 + $0x38] sm:$0xff]
        %v341 = vld [vmem:[#allocation8 + $0x40] sm:$0xff]
        %v342 = vld [vmem:[#allocation8 + $0x48] sm:$0xff]
        %v343 = vld [vmem:[#allocation8 + $0x50] sm:$0xff]
        %v344 = vld [vmem:[#allocation8 + $0x58] sm:$0xff]
        %v345 = vld [vmem:[#allocation8 + $0x60] sm:$0xff]
        %v346 = vld [vmem:[#allocation8 + $0x68] sm:$0xff]
        %v347 = vld [vmem:[#allocation8 + $0x70] sm:$0xff]
        %v348 = vld [vmem:[#allocation8 + $0x78] sm:$0xff]
        %v349 = vld [vmem:[%s3] sm:$0xf]
        %v351 = vlaneseq
        %v352 = vshrl.u32 %v351, 7
        %v353 = vsub.s32 0, %v352
        %v354 = vrot.slane %v349, %v353
        %v355 = vlaneseq
        %v356 = vshrl.u32 %v355, 7
        %v357 = vsub.s32 1, %v356
        %v358 = vrot.slane %v349, %v357
        %v359 = vlaneseq
        %v360 = vshrl.u32 %v359, 7
        %v361 = vsub.s32 2, %v360
        %v362 = vrot.slane %v349, %v361
        %v363 = vlaneseq
        %v364 = vshrl.u32 %v363, 7
        %v365 = vsub.s32 3, %v364
        %v366 = vrot.slane %v349, %v365
        %vm371 = vcmask 261120
        %v373 = vsel %vm371, %v329, 0
        %v376 = vsel %vm371, %v330, 0
        %v379 = vsel %vm371, %v331, 0
        %v382 = vsel %vm371, %v332, 0
        %384 = vmatprep.subr.mxu0 %v334
        %385 = vmatpush1.msra.mxu0 %v333
        %386 = vmatprep.subr.mxu0 %v338
        %387 = vmatpush1.msra.mxu0 %v337
        %388 = vmatprep.subr.mxu0 %v342
        %389 = vmatpush1.msra.mxu0 %v341
        %390 = vmatprep.subr.mxu0 %v346
        %391 = vmatpush1.msra.mxu0 %v345
        %392 = vmatprep.subr.mxu0 0.0
        %393 = vmatpush1.msra.mxu0 0.0
        %394 = vmatprep.subr.mxu0 0.0
        %395 = vmatpush1.msra.mxu0 0.0
        %396 = vmatprep.subr.mxu0 0.0
        %397 = vmatpush1.msra.mxu0 0.0
        %398 = vmatprep.subr.mxu0 0.0
        %399 = vmatpush1.msra.mxu0 0.0
        %400 = vmatprep.subr.mxu0 0.0
        %401 = vmatpush1.msra.mxu0 0.0
        %402 = vmatprep.subr.mxu0 0.0
        %403 = vmatpush1.msra.mxu0 0.0
        %404 = vmatprep.subr.mxu0 0.0
        %405 = vmatpush1.msra.mxu0 0.0
        %406 = vmatprep.subr.mxu0 0.0
        %407 = vmatpush1.msra.mxu0 0.0
        %408 = vmatprep.subr.mxu0 0.0
        %409 = vmatpush1.msra.mxu0 0.0
        %410 = vmatprep.subr.mxu0 0.0
        %411 = vmatpush1.msra.mxu0 0.0
        %412 = vmatprep.subr.mxu0 0.0
        %413 = vmatpush1.msra.mxu0 0.0
        %414 = vmatprep.subr.mxu0 0.0
        %415 = vmatpush1.msra.mxu0 0.0
        %416 = vmatprep.subr.mxu0 0.0
        %417 = vmatpush1.msra.mxu0 0.0
        %418 = vmatprep.subr.mxu0 0.0
        %419 = vmatpush1.msra.mxu0 0.0
        %420 = vmatprep.subr.mxu0 0.0
        %421 = vmatpush1.msra.mxu0 0.0
        %422 = vmatprep.subr.mxu0 0.0
        %423 = vmatpush1.msra.mxu0 0.0
        %424 = vmatprep.subr.mxu0 0.0
        %425 = vmatpush1.msra.mxu0 0.0
        %426 = vmatprep.subr.mxu0 0.0
        %427 = vmatpush1.msra.mxu0 0.0
        %428 = vmatprep.subr.mxu0 0.0
        %429 = vmatpush1.msra.mxu0 0.0
        %430 = vmatprep.subr.mxu0 0.0
        %431 = vmatpush1.msra.mxu0 0.0
        %432 = vmatprep.subr.mxu0 0.0
        %433 = vmatpush1.msra.mxu0 0.0
        %434 = vmatprep.subr.mxu0 0.0
        %435 = vmatpush1.msra.mxu0 0.0
        %436 = vmatprep.subr.mxu0 0.0
        %437 = vmatpush1.msra.mxu0 0.0
        %438 = vmatprep.subr.mxu0 0.0
        %439 = vmatpush1.msra.mxu0 0.0
        %440 = vmatprep.subr.mxu0 0.0
        %441 = vmatpush1.msra.mxu0 0.0
        %442 = vmatprep.subr.mxu0 0.0
        %443 = vmatpush1.msra.mxu0 0.0
        %444 = vmatprep.subr.mxu0 0.0
        %445 = vmatpush1.msra.mxu0 0.0
        %446 = vmatprep.subr.mxu0 0.0
        %447 = vmatpush1.msra.mxu0 0.0
        %448 = vmatprep.mubr.f32.mxu0 0.0
        %449 = vmatmul.mubr.f32.gmra.mrb[0].mxu0 %v373
        %v450 = vpop.f32.mrb[0].mxu0
        %v451 = vadd.f32 %v354, %v450
        %v452 = vpop.f32.mrb[0].mxu0
        %v453 = vadd.f32 %v358, %v452
        %454 = vmatprep.mubr.f32.mxu0 0.0
        %455 = vmatmul.mubr.f32.gmra.mrb[0].mxu0 %v376
        %v456 = vpop.f32.mrb[0].mxu0
        %v457 = vadd.f32 %v354, %v456
        %v458 = vpop.f32.mrb[0].mxu0
        %v459 = vadd.f32 %v358, %v458
        %460 = vmatprep.mubr.f32.mxu0 0.0
        %461 = vmatmul.mubr.f32.gmra.mrb[0].mxu0 %v379
        %v462 = vpop.f32.mrb[0].mxu0
        %v463 = vadd.f32 %v354, %v462
        %v464 = vpop.f32.mrb[0].mxu0
        %v465 = vadd.f32 %v358, %v464
        %466 = vmatprep.mubr.f32.mxu0 0.0
        %467 = vmatmul.mubr.f32.gmra.mrb[0].mxu0 %v382
        %v468 = vpop.f32.mrb[0].mxu0
        %v469 = vadd.f32 %v354, %v468
        %v470 = vpop.f32.mrb[0].mxu0
        %v471 = vadd.f32 %v358, %v470
        %472 = vdwg.mxu0
        %473 = vmatprep.subr.mxu0 %v336
        %474 = vmatpush1.msra.mxu0 %v335
        %475 = vmatprep.subr.mxu0 %v340
        %476 = vmatpush1.msra.mxu0 %v339
        %477 = vmatprep.subr.mxu0 %v344
        %478 = vmatpush1.msra.mxu0 %v343
        %479 = vmatprep.subr.mxu0 %v348
        %480 = vmatpush1.msra.mxu0 %v347
        %481 = vmatprep.subr.mxu0 0.0
        %482 = vmatpush1.msra.mxu0 0.0
        %483 = vmatprep.subr.mxu0 0.0
        %484 = vmatpush1.msra.mxu0 0.0
        %485 = vmatprep.subr.mxu0 0.0
        %486 = vmatpush1.msra.mxu0 0.0
        %487 = vmatprep.subr.mxu0 0.0
        %488 = vmatpush1.msra.mxu0 0.0
        %489 = vmatprep.subr.mxu0 0.0
        %490 = vmatpush1.msra.mxu0 0.0
        %491 = vmatprep.subr.mxu0 0.0
        %492 = vmatpush1.msra.mxu0 0.0
        %493 = vmatprep.subr.mxu0 0.0
        %494 = vmatpush1.msra.mxu0 0.0
        %495 = vmatprep.subr.mxu0 0.0
        %496 = vmatpush1.msra.mxu0 0.0
        %497 = vmatprep.subr.mxu0 0.0
        %498 = vmatpush1.msra.mxu0 0.0
        %499 = vmatprep.subr.mxu0 0.0
        %500 = vmatpush1.msra.mxu0 0.0
        %501 = vmatprep.subr.mxu0 0.0
        %502 = vmatpush1.msra.mxu0 0.0
        %503 = vmatprep.subr.mxu0 0.0
        %504 = vmatpush1.msra.mxu0 0.0
        %505 = vmatprep.subr.mxu0 0.0
        %506 = vmatpush1.msra.mxu0 0.0
        %507 = vmatprep.subr.mxu0 0.0
        %508 = vmatpush1.msra.mxu0 0.0
        %509 = vmatprep.subr.mxu0 0.0
        %510 = vmatpush1.msra.mxu0 0.0
        %511 = vmatprep.subr.mxu0 0.0
        %512 = vmatpush1.msra.mxu0 0.0
        %513 = vmatprep.subr.mxu0 0.0
        %514 = vmatpush1.msra.mxu0 0.0
        %515 = vmatprep.subr.mxu0 0.0
        %516 = vmatpush1.msra.mxu0 0.0
        %517 = vmatprep.subr.mxu0 0.0
        %518 = vmatpush1.msra.mxu0 0.0
        %519 = vmatprep.subr.mxu0 0.0
        %520 = vmatpush1.msra.mxu0 0.0
        %521 = vmatprep.subr.mxu0 0.0
        %522 = vmatpush1.msra.mxu0 0.0
        %523 = vmatprep.subr.mxu0 0.0
        %524 = vmatpush1.msra.mxu0 0.0
        %525 = vmatprep.subr.mxu0 0.0
        %526 = vmatpush1.msra.mxu0 0.0
        %527 = vmatprep.subr.mxu0 0.0
        %528 = vmatpush1.msra.mxu0 0.0
        %529 = vmatprep.subr.mxu0 0.0
        %530 = vmatpush1.msra.mxu0 0.0
        %531 = vmatprep.subr.mxu0 0.0
        %532 = vmatpush1.msra.mxu0 0.0
        %533 = vmatprep.subr.mxu0 0.0
        %534 = vmatpush1.msra.mxu0 0.0
        %535 = vmatprep.subr.mxu0 0.0
        %536 = vmatpush1.msra.mxu0 0.0
        %537 = vmatprep.mubr.f32.mxu0 0.0
        %538 = vmatmul.mubr.f32.gmra.mrb[0].mxu0 %v373
        %v539 = vpop.f32.mrb[0].mxu0
        %v540 = vadd.f32 %v362, %v539
        %v541 = vpop.f32.mrb[0].mxu0
        %v542 = vadd.f32 %v366, %v541
        %543 = vmatprep.mubr.f32.mxu0 0.0
        %544 = vmatmul.mubr.f32.gmra.mrb[0].mxu0 %v376
        %v545 = vpop.f32.mrb[0].mxu0
        %v546 = vadd.f32 %v362, %v545
        %v547 = vpop.f32.mrb[0].mxu0
        %v548 = vadd.f32 %v366, %v547
        %549 = vmatprep.mubr.f32.mxu0 0.0
        %550 = vmatmul.mubr.f32.gmra.mrb[0].mxu0 %v379
        %v551 = vpop.f32.mrb[0].mxu0
        %v552 = vadd.f32 %v362, %v551
        %v553 = vpop.f32.mrb[0].mxu0
        %v554 = vadd.f32 %v366, %v553
        %555 = vmatprep.mubr.f32.mxu0 0.0
        %556 = vmatmul.mubr.f32.gmra.mrb[0].mxu0 %v382
        %v557 = vpop.f32.mrb[0].mxu0
        %v558 = vadd.f32 %v362, %v557
        %v559 = vpop.f32.mrb[0].mxu0
        %v560 = vadd.f32 %v366, %v559
        %561 = vdwg.mxu0
        %562 = vst [vmem:[#allocation4] sm:$0xff] %v451
        %563 = vst [vmem:[#allocation4 + $0x8] sm:$0xff] %v453
        %564 = vst [vmem:[#allocation4 + $0x10] sm:$0xff] %v540
        %565 = vst [vmem:[#allocation4 + $0x18] sm:$0xff] %v542
        %566 = vst [vmem:[#allocation4 + $0x20] sm:$0xff] %v457
        %567 = vst [vmem:[#allocation4 + $0x28] sm:$0xff] %v459
        %568 = vst [vmem:[#allocation4 + $0x30] sm:$0xff] %v546
        %569 = vst [vmem:[#allocation4 + $0x38] sm:$0xff] %v548
        %570 = vst [vmem:[#allocation4 + $0x40] sm:$0xff] %v463
        %571 = vst [vmem:[#allocation4 + $0x48] sm:$0xff] %v465
        %572 = vst [vmem:[#allocation4 + $0x50] sm:$0xff] %v552
        %573 = vst [vmem:[#allocation4 + $0x58] sm:$0xff] %v554
        %574 = vst [vmem:[#allocation4 + $0x60] sm:$0xff] %v469
        %575 = vst [vmem:[#allocation4 + $0x68] sm:$0xff] %v471
        %576 = vst [vmem:[#allocation4 + $0x70] sm:$0xff] %v558
        %577 = vst [vmem:[#allocation4 + $0x78] sm:$0xff] %v560
        %s578 = smul.u32 0, 4
        %s579 = smul.addr %s578, 8
        %s580 = scalar_lea.vmem [#allocation4], %s579
        %v581 = vld [vmem:[%s580] sm:$0xff]
        %v582 = vld [vmem:[%s580 + $0x8] sm:$0xff]
        %v583 = vld [vmem:[%s580 + $0x10] sm:$0xff]
        %v584 = vld [vmem:[%s580 + $0x18] sm:$0xff]
        %v585 = vld [vmem:[#allocation2] sm:$0xff]
        %v586 = vld [vmem:[#allocation10] sm:$0xff]
        %v587 = vld [vmem:[#allocation10 + $0x8] sm:$0xff]
        %v588 = vld [vmem:[#allocation10 + $0x10] sm:$0xff]
        %v589 = vld [vmem:[#allocation10 + $0x18] sm:$0xff]
        %v590 = vld [vmem:[#allocation10 + $0x20] sm:$0xff]
        %v591 = vld [vmem:[#allocation10 + $0x28] sm:$0xff]
        %v592 = vld [vmem:[#allocation10 + $0x30] sm:$0xff]
        %v593 = vld [vmem:[#allocation10 + $0x38] sm:$0xff]
        %v594 = vld [vmem:[#allocation10 + $0x40] sm:$0xff]
        %v595 = vld [vmem:[#allocation10 + $0x48] sm:$0xff]
        %v596 = vld [vmem:[#allocation10 + $0x50] sm:$0xff]
        %v597 = vld [vmem:[#allocation10 + $0x58] sm:$0xff]
        %v598 = vld [vmem:[#allocation10 + $0x60] sm:$0xff]
        %v599 = vld [vmem:[#allocation10 + $0x68] sm:$0xff]
        %v600 = vld [vmem:[#allocation10 + $0x70] sm:$0xff]
        %v601 = vld [vmem:[#allocation10 + $0x78] sm:$0xff]
        %v602 = vld [vmem:[#allocation10 + $0x80] sm:$0xff]
        %v603 = vld [vmem:[#allocation10 + $0x88] sm:$0xff]
        %v604 = vld [vmem:[#allocation10 + $0x90] sm:$0xff]
        %v605 = vld [vmem:[#allocation10 + $0x98] sm:$0xff]
        %v606 = vld [vmem:[#allocation10 + $0xa0] sm:$0xff]
        %v607 = vld [vmem:[#allocation10 + $0xa8] sm:$0xff]
        %v608 = vld [vmem:[#allocation10 + $0xb0] sm:$0xff]
        %v609 = vld [vmem:[#allocation10 + $0xb8] sm:$0xff]
        %v610 = vld [vmem:[#allocation10 + $0xc0] sm:$0xff]
        %v611 = vld [vmem:[#allocation10 + $0xc8] sm:$0xff]
        %v612 = vld [vmem:[#allocation10 + $0xd0] sm:$0xff]
        %v613 = vld [vmem:[#allocation10 + $0xd8] sm:$0xff]
        %v614 = vld [vmem:[#allocation10 + $0xe0] sm:$0xff]
        %v615 = vld [vmem:[#allocation10 + $0xe8] sm:$0xff]
        %v616 = vld [vmem:[#allocation10 + $0xf0] sm:$0xff]
        %v617 = vld [vmem:[#allocation10 + $0xf8] sm:$0xff]
        %v618 = vld [vmem:[#allocation10 + $0x100] sm:$0xff]
        %v619 = vld [vmem:[#allocation10 + $0x108] sm:$0xff]
        %v620 = vld [vmem:[#allocation10 + $0x110] sm:$0xff]
        %v621 = vld [vmem:[#allocation10 + $0x118] sm:$0xff]
        %v622 = vld [vmem:[#allocation10 + $0x120] sm:$0xff]
        %v623 = vld [vmem:[#allocation10 + $0x128] sm:$0xff]
        %v624 = vld [vmem:[#allocation10 + $0x130] sm:$0xff]
        %v625 = vld [vmem:[#allocation10 + $0x138] sm:$0xff]
        %v626 = vld [vmem:[#allocation10 + $0x140] sm:$0xff]
        %v627 = vld [vmem:[#allocation10 + $0x148] sm:$0xff]
        %v628 = vld [vmem:[#allocation10 + $0x150] sm:$0xff]
        %v629 = vld [vmem:[#allocation10 + $0x158] sm:$0xff]
        %v630 = vld [vmem:[#allocation10 + $0x160] sm:$0xff]
        %v631 = vld [vmem:[#allocation10 + $0x168] sm:$0xff]
        %v632 = vld [vmem:[#allocation10 + $0x170] sm:$0xff]
        %v633 = vld [vmem:[#allocation10 + $0x178] sm:$0xff]
        %v634 = vld [vmem:[#allocation10 + $0x180] sm:$0xff]
        %v635 = vld [vmem:[#allocation10 + $0x188] sm:$0xff]
        %v636 = vld [vmem:[#allocation10 + $0x190] sm:$0xff]
        %v637 = vld [vmem:[#allocation10 + $0x198] sm:$0xff]
        %v638 = vld [vmem:[#allocation10 + $0x1a0] sm:$0xff]
        %v639 = vld [vmem:[#allocation10 + $0x1a8] sm:$0xff]
        %v640 = vld [vmem:[#allocation10 + $0x1b0] sm:$0xff]
        %v641 = vld [vmem:[#allocation10 + $0x1b8] sm:$0xff]
        %v642 = vld [vmem:[#allocation10 + $0x1c0] sm:$0xff]
        %v643 = vld [vmem:[#allocation10 + $0x1c8] sm:$0xff]
        %v644 = vld [vmem:[#allocation10 + $0x1d0] sm:$0xff]
        %v645 = vld [vmem:[#allocation10 + $0x1d8] sm:$0xff]
        %v646 = vld [vmem:[#allocation10 + $0x1e0] sm:$0xff]
        %v647 = vld [vmem:[#allocation10 + $0x1e8] sm:$0xff]
        %v648 = vld [vmem:[#allocation10 + $0x1f0] sm:$0xff]
        %v649 = vld [vmem:[#allocation10 + $0x1f8] sm:$0xff]
        %650 = vmatprep.subr.mxu0 %v587
        %651 = vmatpush1.msra.mxu0 %v586
        %652 = vmatprep.subr.mxu0 %v591
        %653 = vmatpush1.msra.mxu0 %v590
        %654 = vmatprep.subr.mxu0 %v595
        %655 = vmatpush1.msra.mxu0 %v594
        %656 = vmatprep.subr.mxu0 %v599
        %657 = vmatpush1.msra.mxu0 %v598
        %658 = vmatprep.subr.mxu0 %v603
        %659 = vmatpush1.msra.mxu0 %v602
        %660 = vmatprep.subr.mxu0 %v607
        %661 = vmatpush1.msra.mxu0 %v606
        %662 = vmatprep.subr.mxu0 %v611
        %663 = vmatpush1.msra.mxu0 %v610
        %664 = vmatprep.subr.mxu0 %v615
        %665 = vmatpush1.msra.mxu0 %v614
        %666 = vmatprep.subr.mxu0 %v619
        %667 = vmatpush1.msra.mxu0 %v618
        %668 = vmatprep.subr.mxu0 %v623
        %669 = vmatpush1.msra.mxu0 %v622
        %670 = vmatprep.subr.mxu0 %v627
        %671 = vmatpush1.msra.mxu0 %v626
        %672 = vmatprep.subr.mxu0 %v631
        %673 = vmatpush1.msra.mxu0 %v630
        %674 = vmatprep.subr.mxu0 %v635
        %675 = vmatpush1.msra.mxu0 %v634
        %676 = vmatprep.subr.mxu0 %v639
        %677 = vmatpush1.msra.mxu0 %v638
        %678 = vmatprep.subr.mxu0 %v643
        %679 = vmatpush1.msra.mxu0 %v642
        %680 = vmatprep.subr.mxu0 %v647
        %681 = vmatpush1.msra.mxu0 %v646
        %682 = vmatprep.subr.mxu0 0.0
        %683 = vmatpush1.msra.mxu0 0.0
        %684 = vmatprep.subr.mxu0 0.0
        %685 = vmatpush1.msra.mxu0 0.0
        %686 = vmatprep.subr.mxu0 0.0
        %687 = vmatpush1.msra.mxu0 0.0
        %688 = vmatprep.subr.mxu0 0.0
        %689 = vmatpush1.msra.mxu0 0.0
        %690 = vmatprep.subr.mxu0 0.0
        %691 = vmatpush1.msra.mxu0 0.0
        %692 = vmatprep.subr.mxu0 0.0
        %693 = vmatpush1.msra.mxu0 0.0
        %694 = vmatprep.subr.mxu0 0.0
        %695 = vmatpush1.msra.mxu0 0.0
        %696 = vmatprep.subr.mxu0 0.0
        %697 = vmatpush1.msra.mxu0 0.0
        %698 = vmatprep.subr.mxu0 0.0
        %699 = vmatpush1.msra.mxu0 0.0
        %700 = vmatprep.subr.mxu0 0.0
        %701 = vmatpush1.msra.mxu0 0.0
        %702 = vmatprep.subr.mxu0 0.0
        %703 = vmatpush1.msra.mxu0 0.0
        %704 = vmatprep.subr.mxu0 0.0
        %705 = vmatpush1.msra.mxu0 0.0
        %706 = vmatprep.subr.mxu0 0.0
        %707 = vmatpush1.msra.mxu0 0.0
        %708 = vmatprep.subr.mxu0 0.0
        %709 = vmatpush1.msra.mxu0 0.0
        %710 = vmatprep.subr.mxu0 0.0
        %711 = vmatpush1.msra.mxu0 0.0
        %712 = vmatprep.subr.mxu0 0.0
        %713 = vmatpush1.msra.mxu0 0.0
        %714 = vmatprep.mubr.f32.mxu0 0.0
        %715 = vmatmul.mubr.f32.gmra.mrb[0].mxu0 %v585
        %v716 = vpop.f32.mrb[0].mxu0
        %v717 = vadd.f32 0.0, %v716
        %v718 = vpop.f32.mrb[0].mxu0
        %v719 = vadd.f32 0.0, %v718
        %720 = vdwg.mxu0
        %721 = vmatprep.subr.mxu0 %v589
        %722 = vmatpush1.msra.mxu0 %v588
        %723 = vmatprep.subr.mxu0 %v593
        %724 = vmatpush1.msra.mxu0 %v592
        %725 = vmatprep.subr.mxu0 %v597
        %726 = vmatpush1.msra.mxu0 %v596
        %727 = vmatprep.subr.mxu0 %v601
        %728 = vmatpush1.msra.mxu0 %v600
        %729 = vmatprep.subr.mxu0 %v605
        %730 = vmatpush1.msra.mxu0 %v604
        %731 = vmatprep.subr.mxu0 %v609
        %732 = vmatpush1.msra.mxu0 %v608
        %733 = vmatprep.subr.mxu0 %v613
        %734 = vmatpush1.msra.mxu0 %v612
        %735 = vmatprep.subr.mxu0 %v617
        %736 = vmatpush1.msra.mxu0 %v616
        %737 = vmatprep.subr.mxu0 %v621
        %738 = vmatpush1.msra.mxu0 %v620
        %739 = vmatprep.subr.mxu0 %v625
        %740 = vmatpush1.msra.mxu0 %v624
        %741 = vmatprep.subr.mxu0 %v629
        %742 = vmatpush1.msra.mxu0 %v628
        %743 = vmatprep.subr.mxu0 %v633
        %744 = vmatpush1.msra.mxu0 %v632
        %745 = vmatprep.subr.mxu0 %v637
        %746 = vmatpush1.msra.mxu0 %v636
        %747 = vmatprep.subr.mxu0 %v641
        %748 = vmatpush1.msra.mxu0 %v640
        %749 = vmatprep.subr.mxu0 %v645
        %750 = vmatpush1.msra.mxu0 %v644
        %751 = vmatprep.subr.mxu0 %v649
        %752 = vmatpush1.msra.mxu0 %v648
        %753 = vmatprep.subr.mxu0 0.0
        %754 = vmatpush1.msra.mxu0 0.0
        %755 = vmatprep.subr.mxu0 0.0
        %756 = vmatpush1.msra.mxu0 0.0
        %757 = vmatprep.subr.mxu0 0.0
        %758 = vmatpush1.msra.mxu0 0.0
        %759 = vmatprep.subr.mxu0 0.0
        %760 = vmatpush1.msra.mxu0 0.0
        %761 = vmatprep.subr.mxu0 0.0
        %762 = vmatpush1.msra.mxu0 0.0
        %763 = vmatprep.subr.mxu0 0.0
        %764 = vmatpush1.msra.mxu0 0.0
        %765 = vmatprep.subr.mxu0 0.0
        %766 = vmatpush1.msra.mxu0 0.0
        %767 = vmatprep.subr.mxu0 0.0
        %768 = vmatpush1.msra.mxu0 0.0
        %769 = vmatprep.subr.mxu0 0.0
        %770 = vmatpush1.msra.mxu0 0.0
        %771 = vmatprep.subr.mxu0 0.0
        %772 = vmatpush1.msra.mxu0 0.0
        %773 = vmatprep.subr.mxu0 0.0
        %774 = vmatpush1.msra.mxu0 0.0
        %775 = vmatprep.subr.mxu0 0.0
        %776 = vmatpush1.msra.mxu0 0.0
        %777 = vmatprep.subr.mxu0 0.0
        %778 = vmatpush1.msra.mxu0 0.0
        %779 = vmatprep.subr.mxu0 0.0
        %780 = vmatpush1.msra.mxu0 0.0
        %781 = vmatprep.subr.mxu0 0.0
        %782 = vmatpush1.msra.mxu0 0.0
        %783 = vmatprep.subr.mxu0 0.0
        %784 = vmatpush1.msra.mxu0 0.0
        %785 = vmatprep.mubr.f32.mxu0 0.0
        %786 = vmatmul.mubr.f32.gmra.mrb[0].mxu0 %v585
        %v787 = vpop.f32.mrb[0].mxu0
        %v788 = vadd.f32 0.0, %v787
        %v789 = vpop.f32.mrb[0].mxu0
        %v790 = vadd.f32 0.0, %v789
        %791 = vdwg.mxu0
        %v792 = vadd.f32 %v581, %v717
        %v793 = vadd.f32 %v582, %v719
        %v794 = vadd.f32 %v583, %v788
        %v795 = vadd.f32 %v584, %v790
        %v796 = vtanh.pop %v792
        %v797 = vtanh.pop %v793
        %v798 = vtanh.pop %v794
        %v799 = vtanh.pop %v795
        %v800 = vadd.f32 %v797, 1.0
        %v801 = vld [vmem:[#allocation3] sm:$0xff]
        %v802 = vmul.f32 %v800, %v801
        %v803 = vadd.f32 %v796, 1.0
        %v804 = vmul.f32 %v803, %v798
        %v805 = vadd.f32 %v802, %v804
        %v806 = vmul.f32 %v805, 0.5
        %807 = vst [vmem:[#allocation3] sm:$0xff] %v806
        %v808 = vadd.f32 %v799, 1.0
        %v809 = vmul.f32 %v808, 0.5
        %v810 = vtanh.pop %v806
        %v811 = vmul.f32 %v809, %v810
        %812 = vst [vmem:[#allocation2] sm:$0xff] %v811
        %s813 = smul.u32 1, 4
        %s814 = smul.addr %s813, 8
        %s815 = scalar_lea.vmem [#allocation4], %s814
        %v816 = vld [vmem:[%s815] sm:$0xff]
        %v817 = vld [vmem:[%s815 + $0x8] sm:$0xff]
        %v818 = vld [vmem:[%s815 + $0x10] sm:$0xff]
        %v819 = vld [vmem:[%s815 + $0x18] sm:$0xff]
        %v820 = vld [vmem:[#allocation2] sm:$0xff]
        %v821 = vld [vmem:[#allocation10] sm:$0xff]
        %v822 = vld [vmem:[#allocation10 + $0x8] sm:$0xff]
        %v823 = vld [vmem:[#allocation10 + $0x10] sm:$0xff]
        %v824 = vld [vmem:[#allocation10 + $0x18] sm:$0xff]
        %v825 = vld [vmem:[#allocation10 + $0x20] sm:$0xff]
        %v826 = vld [vmem:[#allocation10 + $0x28] sm:$0xff]
        %v827 = vld [vmem:[#allocation10 + $0x30] sm:$0xff]
        %v828 = vld [vmem:[#allocation10 + $0x38] sm:$0xff]
        %v829 = vld [vmem:[#allocation10 + $0x40] sm:$0xff]
        %v830 = vld [vmem:[#allocation10 + $0x48] sm:$0xff]
        %v831 = vld [vmem:[#allocation10 + $0x50] sm:$0xff]
        %v832 = vld [vmem:[#allocation10 + $0x58] sm:$0xff]
        %v833 = vld [vmem:[#allocation10 + $0x60] sm:$0xff]
        %v834 = vld [vmem:[#allocation10 + $0x68] sm:$0xff]
        %v835 = vld [vmem:[#allocation10 + $0x70] sm:$0xff]
        %v836 = vld [vmem:[#allocation10 + $0x78] sm:$0xff]
        %v837 = vld [vmem:[#allocation10 + $0x80] sm:$0xff]
        %v838 = vld [vmem:[#allocation10 + $0x88] sm:$0xff]
        %v839 = vld [vmem:[#allocation10 + $0x90] sm:$0xff]
        %v840 = vld [vmem:[#allocation10 + $0x98] sm:$0xff]
        %v841 = vld [vmem:[#allocation10 + $0xa0] sm:$0xff]
        %v842 = vld [vmem:[#allocation10 + $0xa8] sm:$0xff]
        %v843 = vld [vmem:[#allocation10 + $0xb0] sm:$0xff]
        %v844 = vld [vmem:[#allocation10 + $0xb8] sm:$0xff]
        %v845 = vld [vmem:[#allocation10 + $0xc0] sm:$0xff]
        %v846 = vld [vmem:[#allocation10 + $0xc8] sm:$0xff]
        %v847 = vld [vmem:[#allocation10 + $0xd0] sm:$0xff]
        %v848 = vld [vmem:[#allocation10 + $0xd8] sm:$0xff]
        %v849 = vld [vmem:[#allocation10 + $0xe0] sm:$0xff]
        %v850 = vld [vmem:[#allocation10 + $0xe8] sm:$0xff]
        %v851 = vld [vmem:[#allocation10 + $0xf0] sm:$0xff]
        %v852 = vld [vmem:[#allocation10 + $0xf8] sm:$0xff]
        %v853 = vld [vmem:[#allocation10 + $0x100] sm:$0xff]
        %v854 = vld [vmem:[#allocation10 + $0x108] sm:$0xff]
        %v855 = vld [vmem:[#allocation10 + $0x110] sm:$0xff]
        %v856 = vld [vmem:[#allocation10 + $0x118] sm:$0xff]
        %v857 = vld [vmem:[#allocation10 + $0x120] sm:$0xff]
        %v858 = vld [vmem:[#allocation10 + $0x128] sm:$0xff]
        %v859 = vld [vmem:[#allocation10 + $0x130] sm:$0xff]
        %v860 = vld [vmem:[#allocation10 + $0x138] sm:$0xff]
        %v861 = vld [vmem:[#allocation10 + $0x140] sm:$0xff]
        %v862 = vld [vmem:[#allocation10 + $0x148] sm:$0xff]
        %v863 = vld [vmem:[#allocation10 + $0x150] sm:$0xff]
        %v864 = vld [vmem:[#allocation10 + $0x158] sm:$0xff]
        %v865 = vld [vmem:[#allocation10 + $0x160] sm:$0xff]
        %v866 = vld [vmem:[#allocation10 + $0x168] sm:$0xff]
        %v867 = vld [vmem:[#allocation10 + $0x170] sm:$0xff]
        %v868 = vld [vmem:[#allocation10 + $0x178] sm:$0xff]
        %v869 = vld [vmem:[#allocation10 + $0x180] sm:$0xff]
        %v870 = vld [vmem:[#allocation10 + $0x188] sm:$0xff]
        %v871 = vld [vmem:[#allocation10 + $0x190] sm:$0xff]
        %v872 = vld [vmem:[#allocation10 + $0x198] sm:$0xff]
        %v873 = vld [vmem:[#allocation10 + $0x1a0] sm:$0xff]
        %v874 = vld [vmem:[#allocation10 + $0x1a8] sm:$0xff]
        %v875 = vld [vmem:[#allocation10 + $0x1b0] sm:$0xff]
        %v876 = vld [vmem:[#allocation10 + $0x1b8] sm:$0xff]
        %v877 = vld [vmem:[#allocation10 + $0x1c0] sm:$0xff]
        %v878 = vld [vmem:[#allocation10 + $0x1c8] sm:$0xff]
        %v879 = vld [vmem:[#allocation10 + $0x1d0] sm:$0xff]
        %v880 = vld [vmem:[#allocation10 + $0x1d8] sm:$0xff]
        %v881 = vld [vmem:[#allocation10 + $0x1e0] sm:$0xff]
        %v882 = vld [vmem:[#allocation10 + $0x1e8] sm:$0xff]
        %v883 = vld [vmem:[#allocation10 + $0x1f0] sm:$0xff]
        %v884 = vld [vmem:[#allocation10 + $0x1f8] sm:$0xff]
        %885 = vmatprep.subr.mxu0 %v822
        %886 = vmatpush1.msra.mxu0 %v821
        %887 = vmatprep.subr.mxu0 %v826
        %888 = vmatpush1.msra.mxu0 %v825
        %889 = vmatprep.subr.mxu0 %v830
        %890 = vmatpush1.msra.mxu0 %v829
        %891 = vmatprep.subr.mxu0 %v834
        %892 = vmatpush1.msra.mxu0 %v833
        %893 = vmatprep.subr.mxu0 %v838
        %894 = vmatpush1.msra.mxu0 %v837
        %895 = vmatprep.subr.mxu0 %v842
        %896 = vmatpush1.msra.mxu0 %v841
        %897 = vmatprep.subr.mxu0 %v846
        %898 = vmatpush1.msra.mxu0 %v845
        %899 = vmatprep.subr.mxu0 %v850
        %900 = vmatpush1.msra.mxu0 %v849
        %901 = vmatprep.subr.mxu0 %v854
        %902 = vmatpush1.msra.mxu0 %v853
        %903 = vmatprep.subr.mxu0 %v858
        %904 = vmatpush1.msra.mxu0 %v857
        %905 = vmatprep.subr.mxu0 %v862
        %906 = vmatpush1.msra.mxu0 %v861
        %907 = vmatprep.subr.mxu0 %v866
        %908 = vmatpush1.msra.mxu0 %v865
        %909 = vmatprep.subr.mxu0 %v870
        %910 = vmatpush1.msra.mxu0 %v869
        %911 = vmatprep.subr.mxu0 %v874
        %912 = vmatpush1.msra.mxu0 %v873
        %913 = vmatprep.subr.mxu0 %v878
        %914 = vmatpush1.msra.mxu0 %v877
        %915 = vmatprep.subr.mxu0 %v882
        %916 = vmatpush1.msra.mxu0 %v881
        %917 = vmatprep.subr.mxu0 0.0
        %918 = vmatpush1.msra.mxu0 0.0
        %919 = vmatprep.subr.mxu0 0.0
        %920 = vmatpush1.msra.mxu0 0.0
        %921 = vmatprep.subr.mxu0 0.0
        %922 = vmatpush1.msra.mxu0 0.0
        %923 = vmatprep.subr.mxu0 0.0
        %924 = vmatpush1.msra.mxu0 0.0
        %925 = vmatprep.subr.mxu0 0.0
        %926 = vmatpush1.msra.mxu0 0.0
        %927 = vmatprep.subr.mxu0 0.0
        %928 = vmatpush1.msra.mxu0 0.0
        %929 = vmatprep.subr.mxu0 0.0
        %930 = vmatpush1.msra.mxu0 0.0
        %931 = vmatprep.subr.mxu0 0.0
        %932 = vmatpush1.msra.mxu0 0.0
        %933 = vmatprep.subr.mxu0 0.0
        %934 = vmatpush1.msra.mxu0 0.0
        %935 = vmatprep.subr.mxu0 0.0
        %936 = vmatpush1.msra.mxu0 0.0
        %937 = vmatprep.subr.mxu0 0.0
        %938 = vmatpush1.msra.mxu0 0.0
        %939 = vmatprep.subr.mxu0 0.0
        %940 = vmatpush1.msra.mxu0 0.0
        %941 = vmatprep.subr.mxu0 0.0
        %942 = vmatpush1.msra.mxu0 0.0
        %943 = vmatprep.subr.mxu0 0.0
        %944 = vmatpush1.msra.mxu0 0.0
        %945 = vmatprep.subr.mxu0 0.0
        %946 = vmatpush1.msra.mxu0 0.0
        %947 = vmatprep.subr.mxu0 0.0
        %948 = vmatpush1.msra.mxu0 0.0
        %949 = vmatprep.mubr.f32.mxu0 0.0
        %950 = vmatmul.mubr.f32.gmra.mrb[0].mxu0 %v820
        %v951 = vpop.f32.mrb[0].mxu0
        %v952 = vadd.f32 0.0, %v951
        %v953 = vpop.f32.mrb[0].mxu0
        %v954 = vadd.f32 0.0, %v953
        %955 = vdwg.mxu0
        %956 = vmatprep.subr.mxu0 %v824
        %957 = vmatpush1.msra.mxu0 %v823
        %958 = vmatprep.subr.mxu0 %v828
        %959 = vmatpush1.msra.mxu0 %v827
        %960 = vmatprep.subr.mxu0 %v832
        %961 = vmatpush1.msra.mxu0 %v831
        %962 = vmatprep.subr.mxu0 %v836
        %963 = vmatpush1.msra.mxu0 %v835
        %964 = vmatprep.subr.mxu0 %v840
        %965 = vmatpush1.msra.mxu0 %v839
        %966 = vmatprep.subr.mxu0 %v844
        %967 = vmatpush1.msra.mxu0 %v843
        %968 = vmatprep.subr.mxu0 %v848
        %969 = vmatpush1.msra.mxu0 %v847
        %970 = vmatprep.subr.mxu0 %v852
        %971 = vmatpush1.msra.mxu0 %v851
        %972 = vmatprep.subr.mxu0 %v856
        %973 = vmatpush1.msra.mxu0 %v855
        %974 = vmatprep.subr.mxu0 %v860
        %975 = vmatpush1.msra.mxu0 %v859
        %976 = vmatprep.subr.mxu0 %v864
        %977 = vmatpush1.msra.mxu0 %v863
        %978 = vmatprep.subr.mxu0 %v868
        %979 = vmatpush1.msra.mxu0 %v867
        %980 = vmatprep.subr.mxu0 %v872
        %981 = vmatpush1.msra.mxu0 %v871
        %982 = vmatprep.subr.mxu0 %v876
        %983 = vmatpush1.msra.mxu0 %v875
        %984 = vmatprep.subr.mxu0 %v880
        %985 = vmatpush1.msra.mxu0 %v879
        %986 = vmatprep.subr.mxu0 %v884
        %987 = vmatpush1.msra.mxu0 %v883
        %988 = vmatprep.subr.mxu0 0.0
        %989 = vmatpush1.msra.mxu0 0.0
        %990 = vmatprep.subr.mxu0 0.0
        %991 = vmatpush1.msra.mxu0 0.0
        %992 = vmatprep.subr.mxu0 0.0
        %993 = vmatpush1.msra.mxu0 0.0
        %994 = vmatprep.subr.mxu0 0.0
        %995 = vmatpush1.msra.mxu0 0.0
        %996 = vmatprep.subr.mxu0 0.0
        %997 = vmatpush1.msra.mxu0 0.0
        %998 = vmatprep.subr.mxu0 0.0
        %999 = vmatpush1.msra.mxu0 0.0
        %1000 = vmatprep.subr.mxu0 0.0
        %1001 = vmatpush1.msra.mxu0 0.0
        %1002 = vmatprep.subr.mxu0 0.0
        %1003 = vmatpush1.msra.mxu0 0.0
        %1004 = vmatprep.subr.mxu0 0.0
        %1005 = vmatpush1.msra.mxu0 0.0
        %1006 = vmatprep.subr.mxu0 0.0
        %1007 = vmatpush1.msra.mxu0 0.0
        %1008 = vmatprep.subr.mxu0 0.0
        %1009 = vmatpush1.msra.mxu0 0.0
        %1010 = vmatprep.subr.mxu0 0.0
        %1011 = vmatpush1.msra.mxu0 0.0
        %1012 = vmatprep.subr.mxu0 0.0
        %1013 = vmatpush1.msra.mxu0 0.0
        %1014 = vmatprep.subr.mxu0 0.0
        %1015 = vmatpush1.msra.mxu0 0.0
        %1016 = vmatprep.subr.mxu0 0.0
        %1017 = vmatpush1.msra.mxu0 0.0
        %1018 = vmatprep.subr.mxu0 0.0
        %1019 = vmatpush1.msra.mxu0 0.0
        %1020 = vmatprep.mubr.f32.mxu0 0.0
        %1021 = vmatmul.mubr.f32.gmra.mrb[0].mxu0 %v820
        %v1022 = vpop.f32.mrb[0].mxu0
        %v1023 = vadd.f32 0.0, %v1022
        %v1024 = vpop.f32.mrb[0].mxu0
        %v1025 = vadd.f32 0.0, %v1024
        %1026 = vdwg.mxu0
        %v1027 = vadd.f32 %v816, %v952
        %v1028 = vadd.f32 %v817, %v954
        %v1029 = vadd.f32 %v818, %v1023
        %v1030 = vadd.f32 %v819, %v1025
        %v1031 = vtanh.pop %v1027
        %v1032 = vtanh.pop %v1028
        %v1033 = vtanh.pop %v1029
        %v1034 = vtanh.pop %v1030
        %v1035 = vadd.f32 %v1032, 1.0
        %v1036 = vld [vmem:[#allocation3] sm:$0xff]
        %v1037 = vmul.f32 %v1035, %v1036
        %v1038 = vadd.f32 %v1031, 1.0
        %v1039 = vmul.f32 %v1038, %v1033
        %v1040 = vadd.f32 %v1037, %v1039
        %v1041 = vmul.f32 %v1040, 0.5
        %1042 = vst [vmem:[#allocation3] sm:$0xff] %v1041
        %v1043 = vadd.f32 %v1034, 1.0
        %v1044 = vmul.f32 %v1043, 0.5
        %v1045 = vtanh.pop %v1041
        %v1046 = vmul.f32 %v1044, %v1045
        %1047 = vst [vmem:[#allocation2] sm:$0xff] %v1046
        %s1048 = smul.u32 2, 4
        %s1049 = smul.addr %s1048, 8
        %s1050 = scalar_lea.vmem [#allocation4], %s1049
        %v1051 = vld [vmem:[%s1050] sm:$0xff]
        %v1052 = vld [vmem:[%s1050 + $0x8] sm:$0xff]
        %v1053 = vld [vmem:[%s1050 + $0x10] sm:$0xff]
        %v1054 = vld [vmem:[%s1050 + $0x18] sm:$0xff]
        %v1055 = vld [vmem:[#allocation2] sm:$0xff]
        %v1056 = vld [vmem:[#allocation10] sm:$0xff]
        %v1057 = vld [vmem:[#allocation10 + $0x8] sm:$0xff]
        %v1058 = vld [vmem:[#allocation10 + $0x10] sm:$0xff]
        %v1059 = vld [vmem:[#allocation10 + $0x18] sm:$0xff]
        %v1060 = vld [vmem:[#allocation10 + $0x20] sm:$0xff]
        %v1061 = vld [vmem:[#allocation10 + $0x28] sm:$0xff]
        %v1062 = vld [vmem:[#allocation10 + $0x30] sm:$0xff]
        %v1063 = vld [vmem:[#allocation10 + $0x38] sm:$0xff]
        %v1064 = vld [vmem:[#allocation10 + $0x40] sm:$0xff]
        %v1065 = vld [vmem:[#allocation10 + $0x48] sm:$0xff]
        %v1066 = vld [vmem:[#allocation10 + $0x50] sm:$0xff]
        %v1067 = vld [vmem:[#allocation10 + $0x58] sm:$0xff]
        %v1068 = vld [vmem:[#allocation10 + $0x60] sm:$0xff]
        %v1069 = vld [vmem:[#allocation10 + $0x68] sm:$0xff]
        %v1070 = vld [vmem:[#allocation10 + $0x70] sm:$0xff]
        %v1071 = vld [vmem:[#allocation10 + $0x78] sm:$0xff]
        %v1072 = vld [vmem:[#allocation10 + $0x80] sm:$0xff]
        %v1073 = vld [vmem:[#allocation10 + $0x88] sm:$0xff]
        %v1074 = vld [vmem:[#allocation10 + $0x90] sm:$0xff]
        %v1075 = vld [vmem:[#allocation10 + $0x98] sm:$0xff]
        %v1076 = vld [vmem:[#allocation10 + $0xa0] sm:$0xff]
        %v1077 = vld [vmem:[#allocation10 + $0xa8] sm:$0xff]
        %v1078 = vld [vmem:[#allocation10 + $0xb0] sm:$0xff]
        %v1079 = vld [vmem:[#allocation10 + $0xb8] sm:$0xff]
        %v1080 = vld [vmem:[#allocation10 + $0xc0] sm:$0xff]
        %v1081 = vld [vmem:[#allocation10 + $0xc8] sm:$0xff]
        %v1082 = vld [vmem:[#allocation10 + $0xd0] sm:$0xff]
        %v1083 = vld [vmem:[#allocation10 + $0xd8] sm:$0xff]
        %v1084 = vld [vmem:[#allocation10 + $0xe0] sm:$0xff]
        %v1085 = vld [vmem:[#allocation10 + $0xe8] sm:$0xff]
        %v1086 = vld [vmem:[#allocation10 + $0xf0] sm:$0xff]
        %v1087 = vld [vmem:[#allocation10 + $0xf8] sm:$0xff]
        %v1088 = vld [vmem:[#allocation10 + $0x100] sm:$0xff]
        %v1089 = vld [vmem:[#allocation10 + $0x108] sm:$0xff]
        %v1090 = vld [vmem:[#allocation10 + $0x110] sm:$0xff]
        %v1091 = vld [vmem:[#allocation10 + $0x118] sm:$0xff]
        %v1092 = vld [vmem:[#allocation10 + $0x120] sm:$0xff]
        %v1093 = vld [vmem:[#allocation10 + $0x128] sm:$0xff]
        %v1094 = vld [vmem:[#allocation10 + $0x130] sm:$0xff]
        %v1095 = vld [vmem:[#allocation10 + $0x138] sm:$0xff]
        %v1096 = vld [vmem:[#allocation10 + $0x140] sm:$0xff]
        %v1097 = vld [vmem:[#allocation10 + $0x148] sm:$0xff]
        %v1098 = vld [vmem:[#allocation10 + $0x150] sm:$0xff]
        %v1099 = vld [vmem:[#allocation10 + $0x158] sm:$0xff]
        %v1100 = vld [vmem:[#allocation10 + $0x160] sm:$0xff]
        %v1101 = vld [vmem:[#allocation10 + $0x168] sm:$0xff]
        %v1102 = vld [vmem:[#allocation10 + $0x170] sm:$0xff]
        %v1103 = vld [vmem:[#allocation10 + $0x178] sm:$0xff]
        %v1104 = vld [vmem:[#allocation10 + $0x180] sm:$0xff]
        %v1105 = vld [vmem:[#allocation10 + $0x188] sm:$0xff]
        %v1106 = vld [vmem:[#allocation10 + $0x190] sm:$0xff]
        %v1107 = vld [vmem:[#allocation10 + $0x198] sm:$0xff]
        %v1108 = vld [vmem:[#allocation10 + $0x1a0] sm:$0xff]
        %v1109 = vld [vmem:[#allocation10 + $0x1a8] sm:$0xff]
        %v1110 = vld [vmem:[#allocation10 + $0x1b0] sm:$0xff]
        %v1111 = vld [vmem:[#allocation10 + $0x1b8] sm:$0xff]
        %v1112 = vld [vmem:[#allocation10 + $0x1c0] sm:$0xff]
        %v1113 = vld [vmem:[#allocation10 + $0x1c8] sm:$0xff]
        %v1114 = vld [vmem:[#allocation10 + $0x1d0] sm:$0xff]
        %v1115 = vld [vmem:[#allocation10 + $0x1d8] sm:$0xff]
        %v1116 = vld [vmem:[#allocation10 + $0x1e0] sm:$0xff]
        %v1117 = vld [vmem:[#allocation10 + $0x1e8] sm:$0xff]
        %v1118 = vld [vmem:[#allocation10 + $0x1f0] sm:$0xff]
        %v1119 = vld [vmem:[#allocation10 + $0x1f8] sm:$0xff]
        %1120 = vmatprep.subr.mxu0 %v1057
        %1121 = vmatpush1.msra.mxu0 %v1056
        %1122 = vmatprep.subr.mxu0 %v1061
        %1123 = vmatpush1.msra.mxu0 %v1060
        %1124 = vmatprep.subr.mxu0 %v1065
        %1125 = vmatpush1.msra.mxu0 %v1064
        %1126 = vmatprep.subr.mxu0 %v1069
        %1127 = vmatpush1.msra.mxu0 %v1068
        %1128 = vmatprep.subr.mxu0 %v1073
        %1129 = vmatpush1.msra.mxu0 %v1072
        %1130 = vmatprep.subr.mxu0 %v1077
        %1131 = vmatpush1.msra.mxu0 %v1076
        %1132 = vmatprep.subr.mxu0 %v1081
        %1133 = vmatpush1.msra.mxu0 %v1080
        %1134 = vmatprep.subr.mxu0 %v1085
        %1135 = vmatpush1.msra.mxu0 %v1084
        %1136 = vmatprep.subr.mxu0 %v1089
        %1137 = vmatpush1.msra.mxu0 %v1088
        %1138 = vmatprep.subr.mxu0 %v1093
        %1139 = vmatpush1.msra.mxu0 %v1092
        %1140 = vmatprep.subr.mxu0 %v1097
        %1141 = vmatpush1.msra.mxu0 %v1096
        %1142 = vmatprep.subr.mxu0 %v1101
        %1143 = vmatpush1.msra.mxu0 %v1100
        %1144 = vmatprep.subr.mxu0 %v1105
        %1145 = vmatpush1.msra.mxu0 %v1104
        %1146 = vmatprep.subr.mxu0 %v1109
        %1147 = vmatpush1.msra.mxu0 %v1108
        %1148 = vmatprep.subr.mxu0 %v1113
        %1149 = vmatpush1.msra.mxu0 %v1112
        %1150 = vmatprep.subr.mxu0 %v1117
        %1151 = vmatpush1.msra.mxu0 %v1116
        %1152 = vmatprep.subr.mxu0 0.0
        %1153 = vmatpush1.msra.mxu0 0.0
        %1154 = vmatprep.subr.mxu0 0.0
        %1155 = vmatpush1.msra.mxu0 0.0
        %1156 = vmatprep.subr.mxu0 0.0
        %1157 = vmatpush1.msra.mxu0 0.0
        %1158 = vmatprep.subr.mxu0 0.0
        %1159 = vmatpush1.msra.mxu0 0.0
        %1160 = vmatprep.subr.mxu0 0.0
        %1161 = vmatpush1.msra.mxu0 0.0
        %1162 = vmatprep.subr.mxu0 0.0
        %1163 = vmatpush1.msra.mxu0 0.0
        %1164 = vmatprep.subr.mxu0 0.0
        %1165 = vmatpush1.msra.mxu0 0.0
        %1166 = vmatprep.subr.mxu0 0.0
        %1167 = vmatpush1.msra.mxu0 0.0
        %1168 = vmatprep.subr.mxu0 0.0
        %1169 = vmatpush1.msra.mxu0 0.0
        %1170 = vmatprep.subr.mxu0 0.0
        %1171 = vmatpush1.msra.mxu0 0.0
        %1172 = vmatprep.subr.mxu0 0.0
        %1173 = vmatpush1.msra.mxu0 0.0
        %1174 = vmatprep.subr.mxu0 0.0
        %1175 = vmatpush1.msra.mxu0 0.0
        %1176 = vmatprep.subr.mxu0 0.0
        %1177 = vmatpush1.msra.mxu0 0.0
        %1178 = vmatprep.subr.mxu0 0.0
        %1179 = vmatpush1.msra.mxu0 0.0
        %1180 = vmatprep.subr.mxu0 0.0
        %1181 = vmatpush1.msra.mxu0 0.0
        %1182 = vmatprep.subr.mxu0 0.0
        %1183 = vmatpush1.msra.mxu0 0.0
        %1184 = vmatprep.mubr.f32.mxu0 0.0
        %1185 = vmatmul.mubr.f32.gmra.mrb[0].mxu0 %v1055
        %v1186 = vpop.f32.mrb[0].mxu0
        %v1187 = vadd.f32 0.0, %v1186
        %v1188 = vpop.f32.mrb[0].mxu0
        %v1189 = vadd.f32 0.0, %v1188
        %1190 = vdwg.mxu0
        %1191 = vmatprep.subr.mxu0 %v1059
        %1192 = vmatpush1.msra.mxu0 %v1058
        %1193 = vmatprep.subr.mxu0 %v1063
        %1194 = vmatpush1.msra.mxu0 %v1062
        %1195 = vmatprep.subr.mxu0 %v1067
        %1196 = vmatpush1.msra.mxu0 %v1066
        %1197 = vmatprep.subr.mxu0 %v1071
        %1198 = vmatpush1.msra.mxu0 %v1070
        %1199 = vmatprep.subr.mxu0 %v1075
        %1200 = vmatpush1.msra.mxu0 %v1074
        %1201 = vmatprep.subr.mxu0 %v1079
        %1202 = vmatpush1.msra.mxu0 %v1078
        %1203 = vmatprep.subr.mxu0 %v1083
        %1204 = vmatpush1.msra.mxu0 %v1082
        %1205 = vmatprep.subr.mxu0 %v1087
        %1206 = vmatpush1.msra.mxu0 %v1086
        %1207 = vmatprep.subr.mxu0 %v1091
        %1208 = vmatpush1.msra.mxu0 %v1090
        %1209 = vmatprep.subr.mxu0 %v1095
        %1210 = vmatpush1.msra.mxu0 %v1094
        %1211 = vmatprep.subr.mxu0 %v1099
        %1212 = vmatpush1.msra.mxu0 %v1098
        %1213 = vmatprep.subr.mxu0 %v1103
        %1214 = vmatpush1.msra.mxu0 %v1102
        %1215 = vmatprep.subr.mxu0 %v1107
        %1216 = vmatpush1.msra.mxu0 %v1106
        %1217 = vmatprep.subr.mxu0 %v1111
        %1218 = vmatpush1.msra.mxu0 %v1110
        %1219 = vmatprep.subr.mxu0 %v1115
        %1220 = vmatpush1.msra.mxu0 %v1114
        %1221 = vmatprep.subr.mxu0 %v1119
        %1222 = vmatpush1.msra.mxu0 %v1118
        %1223 = vmatprep.subr.mxu0 0.0
        %1224 = vmatpush1.msra.mxu0 0.0
        %1225 = vmatprep.subr.mxu0 0.0
        %1226 = vmatpush1.msra.mxu0 0.0
        %1227 = vmatprep.subr.mxu0 0.0
        %1228 = vmatpush1.msra.mxu0 0.0
        %1229 = vmatprep.subr.mxu0 0.0
        %1230 = vmatpush1.msra.mxu0 0.0
        %1231 = vmatprep.subr.mxu0 0.0
        %1232 = vmatpush1.msra.mxu0 0.0
        %1233 = vmatprep.subr.mxu0 0.0
        %1234 = vmatpush1.msra.mxu0 0.0
        %1235 = vmatprep.subr.mxu0 0.0
        %1236 = vmatpush1.msra.mxu0 0.0
        %1237 = vmatprep.subr.mxu0 0.0
        %1238 = vmatpush1.msra.mxu0 0.0
        %1239 = vmatprep.subr.mxu0 0.0
        %1240 = vmatpush1.msra.mxu0 0.0
        %1241 = vmatprep.subr.mxu0 0.0
        %1242 = vmatpush1.msra.mxu0 0.0
        %1243 = vmatprep.subr.mxu0 0.0
        %1244 = vmatpush1.msra.mxu0 0.0
        %1245 = vmatprep.subr.mxu0 0.0
        %1246 = vmatpush1.msra.mxu0 0.0
        %1247 = vmatprep.subr.mxu0 0.0
        %1248 = vmatpush1.msra.mxu0 0.0
        %1249 = vmatprep.subr.mxu0 0.0
        %1250 = vmatpush1.msra.mxu0 0.0
        %1251 = vmatprep.subr.mxu0 0.0
        %1252 = vmatpush1.msra.mxu0 0.0
        %1253 = vmatprep.subr.mxu0 0.0
        %1254 = vmatpush1.msra.mxu0 0.0
        %1255 = vmatprep.mubr.f32.mxu0 0.0
        %1256 = vmatmul.mubr.f32.gmra.mrb[0].mxu0 %v1055
        %v1257 = vpop.f32.mrb[0].mxu0
        %v1258 = vadd.f32 0.0, %v1257
        %v1259 = vpop.f32.mrb[0].mxu0
        %v1260 = vadd.f32 0.0, %v1259
        %1261 = vdwg.mxu0
        %v1262 = vadd.f32 %v1051, %v1187
        %v1263 = vadd.f32 %v1052, %v1189
        %v1264 = vadd.f32 %v1053, %v1258
        %v1265 = vadd.f32 %v1054, %v1260
        %v1266 = vtanh.pop %v1262
        %v1267 = vtanh.pop %v1263
        %v1268 = vtanh.pop %v1264
        %v1269 = vtanh.pop %v1265
        %v1270 = vadd.f32 %v1267, 1.0
        %v1271 = vld [vmem:[#allocation3] sm:$0xff]
        %v1272 = vmul.f32 %v1270, %v1271
        %v1273 = vadd.f32 %v1266, 1.0
        %v1274 = vmul.f32 %v1273, %v1268
        %v1275 = vadd.f32 %v1272, %v1274
        %v1276 = vmul.f32 %v1275, 0.5
        %1277 = vst [vmem:[#allocation3] sm:$0xff] %v1276
        %v1278 = vadd.f32 %v1269, 1.0
        %v1279 = vmul.f32 %v1278, 0.5
        %v1280 = vtanh.pop %v1276
        %v1281 = vmul.f32 %v1279, %v1280
        %1282 = vst [vmem:[#allocation2] sm:$0xff] %v1281
        %s1283 = smul.u32 3, 4
        %s1284 = smul.addr %s1283, 8
        %s1285 = scalar_lea.vmem [#allocation4], %s1284
        %v1286 = vld [vmem:[%s1285] sm:$0xff]
        %v1287 = vld [vmem:[%s1285 + $0x8] sm:$0xff]
        %v1288 = vld [vmem:[%s1285 + $0x10] sm:$0xff]
        %v1289 = vld [vmem:[%s1285 + $0x18] sm:$0xff]
        %v1290 = vld [vmem:[#allocation2] sm:$0xff]
        %v1291 = vld [vmem:[#allocation10] sm:$0xff]
        %v1292 = vld [vmem:[#allocation10 + $0x8] sm:$0xff]
        %v1293 = vld [vmem:[#allocation10 + $0x10] sm:$0xff]
        %v1294 = vld [vmem:[#allocation10 + $0x18] sm:$0xff]
        %v1295 = vld [vmem:[#allocation10 + $0x20] sm:$0xff]
        %v1296 = vld [vmem:[#allocation10 + $0x28] sm:$0xff]
        %v1297 = vld [vmem:[#allocation10 + $0x30] sm:$0xff]
        %v1298 = vld [vmem:[#allocation10 + $0x38] sm:$0xff]
        %v1299 = vld [vmem:[#allocation10 + $0x40] sm:$0xff]
        %v1300 = vld [vmem:[#allocation10 + $0x48] sm:$0xff]
        %v1301 = vld [vmem:[#allocation10 + $0x50] sm:$0xff]
        %v1302 = vld [vmem:[#allocation10 + $0x58] sm:$0xff]
        %v1303 = vld [vmem:[#allocation10 + $0x60] sm:$0xff]
        %v1304 = vld [vmem:[#allocation10 + $0x68] sm:$0xff]
        %v1305 = vld [vmem:[#allocation10 + $0x70] sm:$0xff]
        %v1306 = vld [vmem:[#allocation10 + $0x78] sm:$0xff]
        %v1307 = vld [vmem:[#allocation10 + $0x80] sm:$0xff]
        %v1308 = vld [vmem:[#allocation10 + $0x88] sm:$0xff]
        %v1309 = vld [vmem:[#allocation10 + $0x90] sm:$0xff]
        %v1310 = vld [vmem:[#allocation10 + $0x98] sm:$0xff]
        %v1311 = vld [vmem:[#allocation10 + $0xa0] sm:$0xff]
        %v1312 = vld [vmem:[#allocation10 + $0xa8] sm:$0xff]
        %v1313 = vld [vmem:[#allocation10 + $0xb0] sm:$0xff]
        %v1314 = vld [vmem:[#allocation10 + $0xb8] sm:$0xff]
        %v1315 = vld [vmem:[#allocation10 + $0xc0] sm:$0xff]
        %v1316 = vld [vmem:[#allocation10 + $0xc8] sm:$0xff]
        %v1317 = vld [vmem:[#allocation10 + $0xd0] sm:$0xff]
        %v1318 = vld [vmem:[#allocation10 + $0xd8] sm:$0xff]
        %v1319 = vld [vmem:[#allocation10 + $0xe0] sm:$0xff]
        %v1320 = vld [vmem:[#allocation10 + $0xe8] sm:$0xff]
        %v1321 = vld [vmem:[#allocation10 + $0xf0] sm:$0xff]
        %v1322 = vld [vmem:[#allocation10 + $0xf8] sm:$0xff]
        %v1323 = vld [vmem:[#allocation10 + $0x100] sm:$0xff]
        %v1324 = vld [vmem:[#allocation10 + $0x108] sm:$0xff]
        %v1325 = vld [vmem:[#allocation10 + $0x110] sm:$0xff]
        %v1326 = vld [vmem:[#allocation10 + $0x118] sm:$0xff]
        %v1327 = vld [vmem:[#allocation10 + $0x120] sm:$0xff]
        %v1328 = vld [vmem:[#allocation10 + $0x128] sm:$0xff]
        %v1329 = vld [vmem:[#allocation10 + $0x130] sm:$0xff]
        %v1330 = vld [vmem:[#allocation10 + $0x138] sm:$0xff]
        %v1331 = vld [vmem:[#allocation10 + $0x140] sm:$0xff]
        %v1332 = vld [vmem:[#allocation10 + $0x148] sm:$0xff]
        %v1333 = vld [vmem:[#allocation10 + $0x150] sm:$0xff]
        %v1334 = vld [vmem:[#allocation10 + $0x158] sm:$0xff]
        %v1335 = vld [vmem:[#allocation10 + $0x160] sm:$0xff]
        %v1336 = vld [vmem:[#allocation10 + $0x168] sm:$0xff]
        %v1337 = vld [vmem:[#allocation10 + $0x170] sm:$0xff]
        %v1338 = vld [vmem:[#allocation10 + $0x178] sm:$0xff]
        %v1339 = vld [vmem:[#allocation10 + $0x180] sm:$0xff]
        %v1340 = vld [vmem:[#allocation10 + $0x188] sm:$0xff]
        %v1341 = vld [vmem:[#allocation10 + $0x190] sm:$0xff]
        %v1342 = vld [vmem:[#allocation10 + $0x198] sm:$0xff]
        %v1343 = vld [vmem:[#allocation10 + $0x1a0] sm:$0xff]
        %v1344 = vld [vmem:[#allocation10 + $0x1a8] sm:$0xff]
        %v1345 = vld [vmem:[#allocation10 + $0x1b0] sm:$0xff]
        %v1346 = vld [vmem:[#allocation10 + $0x1b8] sm:$0xff]
        %v1347 = vld [vmem:[#allocation10 + $0x1c0] sm:$0xff]
        %v1348 = vld [vmem:[#allocation10 + $0x1c8] sm:$0xff]
        %v1349 = vld [vmem:[#allocation10 + $0x1d0] sm:$0xff]
        %v1350 = vld [vmem:[#allocation10 + $0x1d8] sm:$0xff]
        %v1351 = vld [vmem:[#allocation10 + $0x1e0] sm:$0xff]
        %v1352 = vld [vmem:[#allocation10 + $0x1e8] sm:$0xff]
        %v1353 = vld [vmem:[#allocation10 + $0x1f0] sm:$0xff]
        %v1354 = vld [vmem:[#allocation10 + $0x1f8] sm:$0xff]
        %1355 = vmatprep.subr.mxu0 %v1292
        %1356 = vmatpush1.msra.mxu0 %v1291
        %1357 = vmatprep.subr.mxu0 %v1296
        %1358 = vmatpush1.msra.mxu0 %v1295
        %1359 = vmatprep.subr.mxu0 %v1300
        %1360 = vmatpush1.msra.mxu0 %v1299
        %1361 = vmatprep.subr.mxu0 %v1304
        %1362 = vmatpush1.msra.mxu0 %v1303
        %1363 = vmatprep.subr.mxu0 %v1308
        %1364 = vmatpush1.msra.mxu0 %v1307
        %1365 = vmatprep.subr.mxu0 %v1312
        %1366 = vmatpush1.msra.mxu0 %v1311
        %1367 = vmatprep.subr.mxu0 %v1316
        %1368 = vmatpush1.msra.mxu0 %v1315
        %1369 = vmatprep.subr.mxu0 %v1320
        %1370 = vmatpush1.msra.mxu0 %v1319
        %1371 = vmatprep.subr.mxu0 %v1324
        %1372 = vmatpush1.msra.mxu0 %v1323
        %1373 = vmatprep.subr.mxu0 %v1328
        %1374 = vmatpush1.msra.mxu0 %v1327
        %1375 = vmatprep.subr.mxu0 %v1332
        %1376 = vmatpush1.msra.mxu0 %v1331
        %1377 = vmatprep.subr.mxu0 %v1336
        %1378 = vmatpush1.msra.mxu0 %v1335
        %1379 = vmatprep.subr.mxu0 %v1340
        %1380 = vmatpush1.msra.mxu0 %v1339
        %1381 = vmatprep.subr.mxu0 %v1344
        %1382 = vmatpush1.msra.mxu0 %v1343
        %1383 = vmatprep.subr.mxu0 %v1348
        %1384 = vmatpush1.msra.mxu0 %v1347
        %1385 = vmatprep.subr.mxu0 %v1352
        %1386 = vmatpush1.msra.mxu0 %v1351
        %1387 = vmatprep.subr.mxu0 0.0
        %1388 = vmatpush1.msra.mxu0 0.0
        %1389 = vmatprep.subr.mxu0 0.0
        %1390 = vmatpush1.msra.mxu0 0.0
        %1391 = vmatprep.subr.mxu0 0.0
        %1392 = vmatpush1.msra.mxu0 0.0
        %1393 = vmatprep.subr.mxu0 0.0
        %1394 = vmatpush1.msra.mxu0 0.0
        %1395 = vmatprep.subr.mxu0 0.0
        %1396 = vmatpush1.msra.mxu0 0.0
        %1397 = vmatprep.subr.mxu0 0.0
        %1398 = vmatpush1.msra.mxu0 0.0
        %1399 = vmatprep.subr.mxu0 0.0
        %1400 = vmatpush1.msra.mxu0 0.0
        %1401 = vmatprep.subr.mxu0 0.0
        %1402 = vmatpush1.msra.mxu0 0.0
        %1403 = vmatprep.subr.mxu0 0.0
        %1404 = vmatpush1.msra.mxu0 0.0
        %1405 = vmatprep.subr.mxu0 0.0
        %1406 = vmatpush1.msra.mxu0 0.0
        %1407 = vmatprep.subr.mxu0 0.0
        %1408 = vmatpush1.msra.mxu0 0.0
        %1409 = vmatprep.subr.mxu0 0.0
        %1410 = vmatpush1.msra.mxu0 0.0
        %1411 = vmatprep.subr.mxu0 0.0
        %1412 = vmatpush1.msra.mxu0 0.0
        %1413 = vmatprep.subr.mxu0 0.0
        %1414 = vmatpush1.msra.mxu0 0.0
        %1415 = vmatprep.subr.mxu0 0.0
        %1416 = vmatpush1.msra.mxu0 0.0
        %1417 = vmatprep.subr.mxu0 0.0
        %1418 = vmatpush1.msra.mxu0 0.0
        %1419 = vmatprep.mubr.f32.mxu0 0.0
        %1420 = vmatmul.mubr.f32.gmra.mrb[0].mxu0 %v1290
        %v1421 = vpop.f32.mrb[0].mxu0
        %v1422 = vadd.f32 0.0, %v1421
        %v1423 = vpop.f32.mrb[0].mxu0
        %v1424 = vadd.f32 0.0, %v1423
        %1425 = vdwg.mxu0
        %1426 = vmatprep.subr.mxu0 %v1294
        %1427 = vmatpush1.msra.mxu0 %v1293
        %1428 = vmatprep.subr.mxu0 %v1298
        %1429 = vmatpush1.msra.mxu0 %v1297
        %1430 = vmatprep.subr.mxu0 %v1302
        %1431 = vmatpush1.msra.mxu0 %v1301
        %1432 = vmatprep.subr.mxu0 %v1306
        %1433 = vmatpush1.msra.mxu0 %v1305
        %1434 = vmatprep.subr.mxu0 %v1310
        %1435 = vmatpush1.msra.mxu0 %v1309
        %1436 = vmatprep.subr.mxu0 %v1314
        %1437 = vmatpush1.msra.mxu0 %v1313
        %1438 = vmatprep.subr.mxu0 %v1318
        %1439 = vmatpush1.msra.mxu0 %v1317
        %1440 = vmatprep.subr.mxu0 %v1322
        %1441 = vmatpush1.msra.mxu0 %v1321
        %1442 = vmatprep.subr.mxu0 %v1326
        %1443 = vmatpush1.msra.mxu0 %v1325
        %1444 = vmatprep.subr.mxu0 %v1330
        %1445 = vmatpush1.msra.mxu0 %v1329
        %1446 = vmatprep.subr.mxu0 %v1334
        %1447 = vmatpush1.msra.mxu0 %v1333
        %1448 = vmatprep.subr.mxu0 %v1338
        %1449 = vmatpush1.msra.mxu0 %v1337
        %1450 = vmatprep.subr.mxu0 %v1342
        %1451 = vmatpush1.msra.mxu0 %v1341
        %1452 = vmatprep.subr.mxu0 %v1346
        %1453 = vmatpush1.msra.mxu0 %v1345
        %1454 = vmatprep.subr.mxu0 %v1350
        %1455 = vmatpush1.msra.mxu0 %v1349
        %1456 = vmatprep.subr.mxu0 %v1354
        %1457 = vmatpush1.msra.mxu0 %v1353
        %1458 = vmatprep.subr.mxu0 0.0
        %1459 = vmatpush1.msra.mxu0 0.0
        %1460 = vmatprep.subr.mxu0 0.0
        %1461 = vmatpush1.msra.mxu0 0.0
        %1462 = vmatprep.subr.mxu0 0.0
        %1463 = vmatpush1.msra.mxu0 0.0
        %1464 = vmatprep.subr.mxu0 0.0
        %1465 = vmatpush1.msra.mxu0 0.0
        %1466 = vmatprep.subr.mxu0 0.0
        %1467 = vmatpush1.msra.mxu0 0.0
        %1468 = vmatprep.subr.mxu0 0.0
        %1469 = vmatpush1.msra.mxu0 0.0
        %1470 = vmatprep.subr.mxu0 0.0
        %1471 = vmatpush1.msra.mxu0 0.0
        %1472 = vmatprep.subr.mxu0 0.0
        %1473 = vmatpush1.msra.mxu0 0.0
        %1474 = vmatprep.subr.mxu0 0.0
        %1475 = vmatpush1.msra.mxu0 0.0
        %1476 = vmatprep.subr.mxu0 0.0
        %1477 = vmatpush1.msra.mxu0 0.0
        %1478 = vmatprep.subr.mxu0 0.0
        %1479 = vmatpush1.msra.mxu0 0.0
        %1480 = vmatprep.subr.mxu0 0.0
        %1481 = vmatpush1.msra.mxu0 0.0
        %1482 = vmatprep.subr.mxu0 0.0
        %1483 = vmatpush1.msra.mxu0 0.0
        %1484 = vmatprep.subr.mxu0 0.0
        %1485 = vmatpush1.msra.mxu0 0.0
        %1486 = vmatprep.subr.mxu0 0.0
        %1487 = vmatpush1.msra.mxu0 0.0
        %1488 = vmatprep.subr.mxu0 0.0
        %1489 = vmatpush1.msra.mxu0 0.0
        %1490 = vmatprep.mubr.f32.mxu0 0.0
        %1491 = vmatmul.mubr.f32.gmra.mrb[0].mxu0 %v1290
        %v1492 = vpop.f32.mrb[0].mxu0
        %v1493 = vadd.f32 0.0, %v1492
        %v1494 = vpop.f32.mrb[0].mxu0
        %v1495 = vadd.f32 0.0, %v1494
        %1496 = vdwg.mxu0
        %v1497 = vadd.f32 %v1286, %v1422
        %v1498 = vadd.f32 %v1287, %v1424
        %v1499 = vadd.f32 %v1288, %v1493
        %v1500 = vadd.f32 %v1289, %v1495
        %v1501 = vtanh.pop %v1497
        %v1502 = vtanh.pop %v1498
        %v1503 = vtanh.pop %v1499
        %v1504 = vtanh.pop %v1500
        %v1505 = vadd.f32 %v1502, 1.0
        %v1506 = vld [vmem:[#allocation3] sm:$0xff]
        %v1507 = vmul.f32 %v1505, %v1506
        %v1508 = vadd.f32 %v1501, 1.0
        %v1509 = vmul.f32 %v1508, %v1503
        %v1510 = vadd.f32 %v1507, %v1509
        %v1511 = vmul.f32 %v1510, 0.5
        %1512 = vst [vmem:[#allocation3] sm:$0xff] %v1511
        %v1513 = vadd.f32 %v1504, 1.0
        %v1514 = vmul.f32 %v1513, 0.5
        %v1515 = vtanh.pop %v1511
        %v1516 = vmul.f32 %v1514, %v1515
        %1517 = vst [vmem:[#allocation2] sm:$0xff] %v1516
        %p1518 = scmp.eq.s32.totalorder %s28, 1
        // Predicated region
        $region65: #{tpu_custom_call.1} parent=43 // pred_check
          %p1519 = pneg %p1518
        $region66: #{tpu_custom_call.1} parent=43 // pred_check_branch
          %1521 = sbr.rel (%p1519) target = $region68
        $region67: #{tpu_custom_call.1} parent=43 // pred_region
          %v1522 = vld [vmem:[#allocation2] sm:$0xff]
          %v1523 = vld [vmem:[#allocation11] sm:$0xff]
          %v1524 = vld [vmem:[#allocation11 + $0x8] sm:$0xff]
          %v1525 = vld [vmem:[#allocation11 + $0x10] sm:$0xff]
          %v1526 = vld [vmem:[#allocation11 + $0x18] sm:$0xff]
          %v1527 = vld [vmem:[#allocation11 + $0x20] sm:$0xff]
          %v1528 = vld [vmem:[#allocation11 + $0x28] sm:$0xff]
          %v1529 = vld [vmem:[#allocation11 + $0x30] sm:$0xff]
          %v1530 = vld [vmem:[#allocation11 + $0x38] sm:$0xff]
          %v1531 = vld [vmem:[#allocation11 + $0x40] sm:$0xff]
          %v1532 = vld [vmem:[#allocation11 + $0x48] sm:$0xff]
          %v1533 = vld [vmem:[#allocation11 + $0x50] sm:$0xff]
          %v1534 = vld [vmem:[#allocation11 + $0x58] sm:$0xff]
          %v1535 = vld [vmem:[#allocation11 + $0x60] sm:$0xff]
          %v1536 = vld [vmem:[#allocation11 + $0x68] sm:$0xff]
          %v1537 = vld [vmem:[#allocation11 + $0x70] sm:$0xff]
          %v1538 = vld [vmem:[#allocation11 + $0x78] sm:$0xff]
          %v1539 = vld [vmem:[%s5] sm:$0x1]
          %v1541 = vlaneseq
          %v1542 = vshrl.u32 %v1541, 7
          %v1543 = vsub.s32 0, %v1542
          %v1544 = vrot.slane %v1539, %v1543
          %1546 = vmatprep.subr.mxu0 0.0
          %1547 = vmatpush1.msra.mxu0 %v1523
          %1548 = vmatprep.subr.mxu0 0.0
          %1549 = vmatpush1.msra.mxu0 %v1524
          %1550 = vmatprep.subr.mxu0 0.0
          %1551 = vmatpush1.msra.mxu0 %v1525
          %1552 = vmatprep.subr.mxu0 0.0
          %1553 = vmatpush1.msra.mxu0 %v1526
          %1554 = vmatprep.subr.mxu0 0.0
          %1555 = vmatpush1.msra.mxu0 %v1527
          %1556 = vmatprep.subr.mxu0 0.0
          %1557 = vmatpush1.msra.mxu0 %v1528
          %1558 = vmatprep.subr.mxu0 0.0
          %1559 = vmatpush1.msra.mxu0 %v1529
          %1560 = vmatprep.subr.mxu0 0.0
          %1561 = vmatpush1.msra.mxu0 %v1530
          %1562 = vmatprep.subr.mxu0 0.0
          %1563 = vmatpush1.msra.mxu0 %v1531
          %1564 = vmatprep.subr.mxu0 0.0
          %1565 = vmatpush1.msra.mxu0 %v1532
          %1566 = vmatprep.subr.mxu0 0.0
          %1567 = vmatpush1.msra.mxu0 %v1533
          %1568 = vmatprep.subr.mxu0 0.0
          %1569 = vmatpush1.msra.mxu0 %v1534
          %1570 = vmatprep.subr.mxu0 0.0
          %1571 = vmatpush1.msra.mxu0 %v1535
          %1572 = vmatprep.subr.mxu0 0.0
          %1573 = vmatpush1.msra.mxu0 %v1536
          %1574 = vmatprep.subr.mxu0 0.0
          %1575 = vmatpush1.msra.mxu0 %v1537
          %1576 = vmatprep.subr.mxu0 0.0
          %1577 = vmatpush1.msra.mxu0 %v1538
          %1578 = vmatprep.subr.mxu0 0.0
          %1579 = vmatpush1.msra.mxu0 0.0
          %1580 = vmatprep.subr.mxu0 0.0
          %1581 = vmatpush1.msra.mxu0 0.0
          %1582 = vmatprep.subr.mxu0 0.0
          %1583 = vmatpush1.msra.mxu0 0.0
          %1584 = vmatprep.subr.mxu0 0.0
          %1585 = vmatpush1.msra.mxu0 0.0
          %1586 = vmatprep.subr.mxu0 0.0
          %1587 = vmatpush1.msra.mxu0 0.0
          %1588 = vmatprep.subr.mxu0 0.0
          %1589 = vmatpush1.msra.mxu0 0.0
          %1590 = vmatprep.subr.mxu0 0.0
          %1591 = vmatpush1.msra.mxu0 0.0
          %1592 = vmatprep.subr.mxu0 0.0
          %1593 = vmatpush1.msra.mxu0 0.0
          %1594 = vmatprep.subr.mxu0 0.0
          %1595 = vmatpush1.msra.mxu0 0.0
          %1596 = vmatprep.subr.mxu0 0.0
          %1597 = vmatpush1.msra.mxu0 0.0
          %1598 = vmatprep.subr.mxu0 0.0
          %1599 = vmatpush1.msra.mxu0 0.0
          %1600 = vmatprep.subr.mxu0 0.0
          %1601 = vmatpush1.msra.mxu0 0.0
          %1602 = vmatprep.subr.mxu0 0.0
          %1603 = vmatpush1.msra.mxu0 0.0
          %1604 = vmatprep.subr.mxu0 0.0
          %1605 = vmatpush1.msra.mxu0 0.0
          %1606 = vmatprep.subr.mxu0 0.0
          %1607 = vmatpush1.msra.mxu0 0.0
          %1608 = vmatprep.subr.mxu0 0.0
          %1609 = vmatpush1.msra.mxu0 0.0
          %1610 = vmatprep.mubr.f32.mxu0 0.0
          %1611 = vmatmul.mubr.f32.gmra.mrb[0].mxu0 %v1522
          %v1612 = vpop.f32.mrb[0].mxu0
          %v1613 = vadd.f32 %v1544, %v1612
          %v1614 = vpop.f32.mrb[0].mxu0
          %1615 = vdwg.mxu0
          %1616 = vst [vmem:[#allocation13] sm:$0xff] %v1613
        $region68: #{tpu_custom_call.1} parent=43 // pred_fallthru
          _
        // Predicated region
        $region69: #{tpu_custom_call.1} parent=43 // pred_check
          %p1617 = pneg %p186
        $region70: #{tpu_custom_call.1} parent=43 // pred_check_branch
          %1619 = sbr.rel (%p1617) target = $region72
        $region71: #{tpu_custom_call.1} parent=43 // pred_region
          %s1621 = ssub.s32 128, 128
          %1622 = vsyncadd [#allocation7], %s1621
          %s1623 = smul.addr %s27, 128
          %s1624 = scalar_lea.hbm %s6, %s1623
          %s1626 = sshll.u32 [#allocation13], 4
          %s1627 = int_to_ptr.vmem [resolvable:$true] %s1626
          %1629 = dma.vmem_to_hbm [thread:$0]  %s1627, 128, %s1624, [#allocation7]
        $region72: #{tpu_custom_call.1} parent=43 // pred_fallthru
          _
        // Predicated region
        $region73: #{tpu_custom_call.1} parent=43 // pred_check
          %p1630 = pneg %p186
        $region74: #{tpu_custom_call.1} parent=43 // pred_check_branch
          %1632 = sbr.rel (%p1630) target = $region76
        $region75: #{tpu_custom_call.1} parent=43 // pred_region
          %1633 = dma.done [#allocation7], 128
        $region76: #{tpu_custom_call.1} parent=43 // pred_fallthru
          _
      $region44: #{tpu_custom_call.1} parent=5 // pred_fallthru
        _
      %p1634 = scmp.le.s32.totalorder 2, %s18
      // Predicated region
      $region77: #{tpu_custom_call.1} parent=5 // pred_check
        %p1635 = pneg %p1634
      $region78: #{tpu_custom_call.1} parent=5 // pred_check_branch
        %1637 = sbr.rel (%p1635) target = $region80
      $region79: #{tpu_custom_call.1} parent=5 // pred_region
        %s1638 = ssub.s32 %s18, 2
      $region80: #{tpu_custom_call.1} parent=5 // pred_fallthru
        _
    $region6: #{tpu_custom_call.1} parent=1 // loop_footer
      %s22 = sadd.s32 1, %s18
    $region7: #{tpu_custom_call.1} parent=1 // loop_footer_branch
      %17 = sbr.rel target = $region3
    $region8: #{tpu_custom_call.1} parent=1 // loop_exit
      _
    %1639 = vsyncpa [#allocation6], 1
    %s1640 = scalar_lea.sflag [#allocation6], 1
    %1641 = vsyncpa %s1640, 1
    %1642 = vsyncpa [#allocation9], 1
    %1643 = vsyncpa [#allocation12], 1
    %1644 = vsyncpa [#allocation7], 1
    %s1645 = scalar_lea.sflag [#allocation7], 1
    %1646 = vsyncpa %s1645, 1

</llo_original>
